<compile_context>
chip_gen: v7x
topology: tpu7x:2x2x1
jax: 0.10.0
libtpu: 0.0.40
codegen_flags: <defaults>
</compile_context>

<pallas_src>
import math
from functools import partial

import jax
import jax.numpy as jnp
from jax.experimental import pallas as pl
from jax.experimental.pallas import tpu as pltpu

LAYER_DIMS = [403, 300, 200, 100, 50, 25, 12, 1]        # 7 Linear layers
PAD_DIMS   = [512, 384, 256, 128, 128, 128, 128, 128]   # lane-aligned (multiples of 128)
NUM_BN = 6                                              # BN after the first 6 Linear layers
BN_EPS = 1e-5


def _round_up(x, m):
    return ((x + m - 1) // m) * m


# ----------------------------------------------------------------------------- kernel
def ftd_kernel(x_ref,
               w1, b1, w2, b2, w3, b3, w4, b4, w5, b5, w6, b6, w7, b7,
               o_ref):
    def linear(x, w_ref, b_ref):
        # bf16 x bf16 on the MXU, f32 accumulation; f32 bias add.
        return jnp.dot(x.astype(jnp.bfloat16), w_ref[...],
                       preferred_element_type=jnp.float32) + b_ref[...]

    x = x_ref[...]                                    # bf16 (tile_b, 512), already padded
    # Linear(+folded BN) + ReLU   (Dropout = identity in eval mode)
    x = jnp.maximum(linear(x, w1, b1), 0.0)
    x = jnp.maximum(linear(x, w2, b2), 0.0)
    x = jnp.maximum(linear(x, w3, b3), 0.0)
    # Linear(+folded BN) + ReLU6
    x = jnp.clip(linear(x, w4, b4), 0.0, 6.0)
    x = jnp.clip(linear(x, w5, b5), 0.0, 6.0)
    x = jnp.clip(linear(x, w6, b6), 0.0, 6.0)
    # final Linear(12 -> 1) + Sigmoid; only lane 0 of the padded 128-wide result is real.
    x = linear(x, w7, b7)                             # (tile_b, 128) f32
    o_ref[...] = jax.nn.sigmoid(x[:, :1])             # (tile_b, 1) store -> tiny HBM write


# ------------------------------------------------------------------- parameter helpers
def init_params(key):
    """Deterministic PyTorch-style init: U(-1/sqrt(fan_in), 1/sqrt(fan_in)) + BN defaults."""
    ws, bs = [], []
    for i in range(len(LAYER_DIMS) - 1):
        fan_in, fan_out = LAYER_DIMS[i], LAYER_DIMS[i + 1]
        key, kw, kb = jax.random.split(key, 3)
        bound = 1.0 / math.sqrt(fan_in)
        ws.append(jax.random.uniform(kw, (fan_in, fan_out), jnp.float32, -bound, bound))
        bs.append(jax.random.uniform(kb, (fan_out,), jnp.float32, -bound, bound))
    # BatchNorm1d(1) defaults: gamma=1, beta=0, running_mean=0, running_var=1.
    gamma = jnp.ones((NUM_BN,), jnp.float32)
    beta = jnp.zeros((NUM_BN,), jnp.float32)
    run_mean = jnp.zeros((NUM_BN,), jnp.float32)
    run_var = jnp.ones((NUM_BN,), jnp.float32)
    return ws, bs, (gamma, beta, run_mean, run_var)


def prepare_params(ws, bs, bn_stats):
    """Fold eval-mode BN into W/b, zero-pad to lane-aligned dims, cast W to bf16."""
    gamma, beta, run_mean, run_var = bn_stats
    scale = gamma / jnp.sqrt(run_var + BN_EPS)          # (NUM_BN,)
    shift = beta - run_mean * scale

    wps, bps = [], []
    for i in range(len(ws)):
        w, b = ws[i], bs[i]
        if i < NUM_BN:  # fold the scalar BN affine (num_features=1) into the Linear
            w = w * scale[i]
            b = b * scale[i] + shift[i]
        in_d, out_d = LAYER_DIMS[i], LAYER_DIMS[i + 1]
        pin, pout = PAD_DIMS[i], PAD_DIMS[i + 1]
        wp = jnp.zeros((pin, pout), jnp.float32).at[:in_d, :out_d].set(w)
        bp = jnp.zeros((1, pout), jnp.float32).at[0, :out_d].set(b)
        wps.append(wp.astype(jnp.bfloat16))             # bf16 weights: half the DMA
        bps.append(bp)                                   # f32 biases (tiny)
    return wps, bps


# ----------------------------------------------------------------------------- wrapper
def _choose_tile_b(B, max_tile=512):
    """Sublane/lane-aligned batch tile.

    * tiny batches (<=128 rows): one minimal tile (nothing to split).
    * larger batches: 128-row granularity, >=2 grid steps (v7x has 2 TensorCores and the
      batch axis is marked "parallel"), capped at 512 so double-buffered bf16 input tiles
      (~0.5 MiB each) plus ~1.5 MiB of resident weights stay far below every chip's
      default scoped-VMEM limit (16/32 MiB).
    """
    rows = _round_up(max(B, 1), 8)
    if rows <= 128:
        return rows
    tile = _round_up(-(-rows // 2), 128)     # ceil(rows/2) rounded up to 128
    return min(tile, max_tile)


@partial(jax.jit, static_argnames=("tile_b",))
def _ftd_forward_impl(inp, wps, bps, tile_b):
    B = inp.shape[0]
    b_pad = _round_up(B, tile_b)

    # squeeze channel, cast to bf16, pad rows + lanes -- all fused under this jit,
    # so no separate padded f32 copy of the input is materialized.
    x = inp[:, 0, :].astype(jnp.bfloat16)
    x = jnp.pad(x, ((0, b_pad - B), (0, PAD_DIMS[0] - LAYER_DIMS[0])))

    flat_wb = []
    for w, b in zip(wps, bps):
        flat_wb.extend([w, b])

    in_specs = [pl.BlockSpec((tile_b, PAD_DIMS[0]), lambda i: (i, 0))]
    for w, b in zip(wps, bps):
        # constant index_map: weights/biases DMA'd once, stay resident across grid steps
        in_specs.append(pl.BlockSpec(w.shape, lambda i: (0, 0)))
        in_specs.append(pl.BlockSpec(b.shape, lambda i: (0, 0)))

    out = pl.pallas_call(
        ftd_kernel,
        out_shape=jax.ShapeDtypeStruct((b_pad, 1), jnp.float32),   # no padded-lane writeback
        grid_spec=pltpu.PrefetchScalarGridSpec(
            num_scalar_prefetch=0,
            grid=(b_pad // tile_b,),
            in_specs=in_specs,
            out_specs=pl.BlockSpec((tile_b, 1), lambda i: (i, 0)),
        ),
        compiler_params=pltpu.CompilerParams(
            dimension_semantics=("parallel",)),  # shards batch tiles across TCs on v7x
    )(x, *flat_wb)

    # slice away row padding -> (B, 1, 1) to match the PyTorch output layout
    return out[:B][:, None, :]


def ftd_forward(inp, wps, bps, *, tile_b=None):
    if tile_b is None:
        tile_b = _choose_tile_b(inp.shape[0])
    return _ftd_forward_impl(inp, tuple(wps), tuple(bps), tile_b)


# -------------------------------------------------------------------------- references
def ftd_reference_matched(inp, wps, bps):
    """Pure-JAX reference using the same folded/padded/bf16 params as the kernel."""
    x = inp[:, 0, :].astype(jnp.bfloat16)
    x = jnp.pad(x, ((0, 0), (0, PAD_DIMS[0] - LAYER_DIMS[0])))
    acts = [jax.nn.relu] * 3 + [lambda v: jnp.clip(v, 0.0, 6.0)] * 3
    for i in range(6):
        x = jnp.dot(x.astype(jnp.bfloat16), wps[i],
                    preferred_element_type=jnp.float32) + bps[i]
        x = acts[i](x)
    x = jnp.dot(x.astype(jnp.bfloat16), wps[6],
                preferred_element_type=jnp.float32) + bps[6]
    x = jax.nn.sigmoid(x)
    return x[:, :1][:, None, :]


def ftd_reference_f32(inp, ws, bs, bn_stats):
    """Full-precision eval-mode reference of the original FTDNetwork (no folding/padding)."""
    gamma, beta, run_mean, run_var = bn_stats
    x = inp[:, 0, :].astype(jnp.float32)
    acts = [jax.nn.relu] * 3 + [lambda v: jnp.clip(v, 0.0, 6.0)] * 3
    for i in range(6):
        x = x @ ws[i] + bs[i]
        x = (x - run_mean[i]) / jnp.sqrt(run_var[i] + BN_EPS) * gamma[i] + beta[i]
        x = acts[i](x)
    x = x @ ws[6] + bs[6]
    return jax.nn.sigmoid(x)[:, None, :]


if __name__ == "__main__":
    key = jax.random.PRNGKey(0)
    key, kx1, kx2 = jax.random.split(key, 3)
    ws, bs, bn_stats = init_params(key)
    wps, bps = prepare_params(ws, bs, bn_stats)

    # small batch: single-tile path
    B1 = 16
    inp1 = jax.random.normal(kx1, (B1, 1, 403), dtype=jnp.float32)
    out1 = jax.block_until_ready(ftd_forward(inp1, wps, bps))
    assert out1.shape == (B1, 1, 1), out1.shape
    assert jnp.allclose(out1, ftd_reference_matched(inp1, wps, bps), atol=1e-3, rtol=1e-3), \
        "mismatch vs matched (bf16, folded) reference"
    # documented loose tolerance vs the true f32 model: bf16 weights/activations
    assert jnp.allclose(out1, ftd_reference_f32(inp1, ws, bs, bn_stats), atol=5e-2), \
        "mismatch vs f32 reference beyond bf16 tolerance"

    # moderate batch: exercises a >1-step grid (adaptive tile, padded rows)
    B2 = 384
    inp2 = jax.random.normal(kx2, (B2, 1, 403), dtype=jnp.float32)
    out2 = jax.block_until_ready(ftd_forward(inp2, wps, bps))
    assert out2.shape == (B2, 1, 1), out2.shape
    assert jnp.allclose(out2, ftd_reference_matched(inp2, wps, bps), atol=1e-3, rtol=1e-3), \
        "mismatch vs matched reference (multi-tile grid)"

    print("KERNEL_OK")
</pallas_src>

<mosaic_0001>
module attributes {stable_mosaic.version = 11 : i64} {
  func.func @ftd_kernel(%arg0: i32, %arg1: memref<16x512xbf16, #tpu.memory_space<vmem>>, %arg2: memref<512x384xbf16, #tpu.memory_space<vmem>>, %arg3: memref<1x384xf32, #tpu.memory_space<vmem>>, %arg4: memref<384x256xbf16, #tpu.memory_space<vmem>>, %arg5: memref<1x256xf32, #tpu.memory_space<vmem>>, %arg6: memref<256x128xbf16, #tpu.memory_space<vmem>>, %arg7: memref<1x128xf32, #tpu.memory_space<vmem>>, %arg8: memref<128x128xbf16, #tpu.memory_space<vmem>>, %arg9: memref<1x128xf32, #tpu.memory_space<vmem>>, %arg10: memref<128x128xbf16, #tpu.memory_space<vmem>>, %arg11: memref<1x128xf32, #tpu.memory_space<vmem>>, %arg12: memref<128x128xbf16, #tpu.memory_space<vmem>>, %arg13: memref<1x128xf32, #tpu.memory_space<vmem>>, %arg14: memref<128x128xbf16, #tpu.memory_space<vmem>>, %arg15: memref<1x128xf32, #tpu.memory_space<vmem>>, %arg16: memref<16x1xf32, #tpu.memory_space<vmem>>) attributes {dimension_semantics = [#tpu.dimension_semantics<parallel>], iteration_bounds = array<i64: 1>, scalar_prefetch = 0 : i64, scratch_operands = 0 : i64, tpu.core_type = #tpu.core_type<tc>, window_params = [{transform_indices = @transform_0, window_bounds = array<i64: 16, 512>}, {pipeline_mode = #tpu.pipeline_mode<synchronous>, transform_indices = @transform_1, window_bounds = array<i64: 512, 384>}, {pipeline_mode = #tpu.pipeline_mode<synchronous>, transform_indices = @transform_2, window_bounds = array<i64: 1, 384>}, {pipeline_mode = #tpu.pipeline_mode<synchronous>, transform_indices = @transform_3, window_bounds = array<i64: 384, 256>}, {pipeline_mode = #tpu.pipeline_mode<synchronous>, transform_indices = @transform_4, window_bounds = array<i64: 1, 256>}, {pipeline_mode = #tpu.pipeline_mode<synchronous>, transform_indices = @transform_5, window_bounds = array<i64: 256, 128>}, {pipeline_mode = #tpu.pipeline_mode<synchronous>, transform_indices = @transform_6, window_bounds = array<i64: 1, 128>}, {pipeline_mode = #tpu.pipeline_mode<synchronous>, transform_indices = @transform_7, window_bounds = array<i64: 128, 128>}, {pipeline_mode = #tpu.pipeline_mode<synchronous>, transform_indices = @transform_8, window_bounds = array<i64: 1, 128>}, {pipeline_mode = #tpu.pipeline_mode<synchronous>, transform_indices = @transform_9, window_bounds = array<i64: 128, 128>}, {pipeline_mode = #tpu.pipeline_mode<synchronous>, transform_indices = @transform_10, window_bounds = array<i64: 1, 128>}, {pipeline_mode = #tpu.pipeline_mode<synchronous>, transform_indices = @transform_11, window_bounds = array<i64: 128, 128>}, {pipeline_mode = #tpu.pipeline_mode<synchronous>, transform_indices = @transform_12, window_bounds = array<i64: 1, 128>}, {pipeline_mode = #tpu.pipeline_mode<synchronous>, transform_indices = @transform_13, window_bounds = array<i64: 128, 128>}, {pipeline_mode = #tpu.pipeline_mode<synchronous>, transform_indices = @transform_14, window_bounds = array<i64: 1, 128>}, {transform_indices = @transform_15, window_bounds = array<i64: 16, 1>}]} {
    %c0 = arith.constant 0 : index
    %c0_0 = arith.constant 0 : index
    %0 = vector.load %arg1[%c0, %c0_0] : memref<16x512xbf16, #tpu.memory_space<vmem>>, vector<16x512xbf16>
    %c0_1 = arith.constant 0 : index
    %c0_2 = arith.constant 0 : index
    %1 = vector.load %arg2[%c0_1, %c0_2] : memref<512x384xbf16, #tpu.memory_space<vmem>>, vector<512x384xbf16>
    %cst = arith.constant dense<0.000000e+00> : vector<16x384xf32>
    %2 = tpu.matmul %0, %1, %cst {dimension_numbers = #tpu.dot_dimension_numbers<[1], [0], [0], [1], [0, 0, 1, 1], [], []>} : vector<16x512xbf16>, vector<512x384xbf16>, vector<16x384xf32> -> vector<16x384xf32>
    %c0_3 = arith.constant 0 : index
    %c0_4 = arith.constant 0 : index
    %3 = vector.load %arg3[%c0_3, %c0_4] : memref<1x384xf32, #tpu.memory_space<vmem>>, vector<1x384xf32>
    %4 = vector.broadcast %3 : vector<1x384xf32> to vector<16x384xf32>
    %5 = arith.addf %2, %4 : vector<16x384xf32>
    %cst_5 = arith.constant 0.000000e+00 : f32
    %6 = vector.broadcast %cst_5 : f32 to vector<16x384xf32>
    %7 = arith.maximumf %5, %6 : vector<16x384xf32>
    %8 = arith.truncf %7 : vector<16x384xf32> to vector<16x384xbf16>
    %c0_6 = arith.constant 0 : index
    %c0_7 = arith.constant 0 : index
    %9 = vector.load %arg4[%c0_6, %c0_7] : memref<384x256xbf16, #tpu.memory_space<vmem>>, vector<384x256xbf16>
    %cst_8 = arith.constant dense<0.000000e+00> : vector<16x256xf32>
    %10 = tpu.matmul %8, %9, %cst_8 {dimension_numbers = #tpu.dot_dimension_numbers<[1], [0], [0], [1], [0, 0, 1, 1], [], []>} : vector<16x384xbf16>, vector<384x256xbf16>, vector<16x256xf32> -> vector<16x256xf32>
    %c0_9 = arith.constant 0 : index
    %c0_10 = arith.constant 0 : index
    %11 = vector.load %arg5[%c0_9, %c0_10] : memref<1x256xf32, #tpu.memory_space<vmem>>, vector<1x256xf32>
    %12 = vector.broadcast %11 : vector<1x256xf32> to vector<16x256xf32>
    %13 = arith.addf %10, %12 : vector<16x256xf32>
    %cst_11 = arith.constant 0.000000e+00 : f32
    %14 = vector.broadcast %cst_11 : f32 to vector<16x256xf32>
    %15 = arith.maximumf %13, %14 : vector<16x256xf32>
    %16 = arith.truncf %15 : vector<16x256xf32> to vector<16x256xbf16>
    %c0_12 = arith.constant 0 : index
    %c0_13 = arith.constant 0 : index
    %17 = vector.load %arg6[%c0_12, %c0_13] : memref<256x128xbf16, #tpu.memory_space<vmem>>, vector<256x128xbf16>
    %cst_14 = arith.constant dense<0.000000e+00> : vector<16x128xf32>
    %18 = tpu.matmul %16, %17, %cst_14 {dimension_numbers = #tpu.dot_dimension_numbers<[1], [0], [0], [1], [0, 0, 1, 1], [], []>} : vector<16x256xbf16>, vector<256x128xbf16>, vector<16x128xf32> -> vector<16x128xf32>
    %c0_15 = arith.constant 0 : index
    %c0_16 = arith.constant 0 : index
    %19 = vector.load %arg7[%c0_15, %c0_16] : memref<1x128xf32, #tpu.memory_space<vmem>>, vector<1x128xf32>
    %20 = vector.broadcast %19 : vector<1x128xf32> to vector<16x128xf32>
    %21 = arith.addf %18, %20 : vector<16x128xf32>
    %cst_17 = arith.constant 0.000000e+00 : f32
    %22 = vector.broadcast %cst_17 : f32 to vector<16x128xf32>
    %23 = arith.maximumf %21, %22 : vector<16x128xf32>
    %24 = arith.truncf %23 : vector<16x128xf32> to vector<16x128xbf16>
    %c0_18 = arith.constant 0 : index
    %c0_19 = arith.constant 0 : index
    %25 = vector.load %arg8[%c0_18, %c0_19] : memref<128x128xbf16, #tpu.memory_space<vmem>>, vector<128x128xbf16>
    %cst_20 = arith.constant dense<0.000000e+00> : vector<16x128xf32>
    %26 = tpu.matmul %24, %25, %cst_20 {dimension_numbers = #tpu.dot_dimension_numbers<[1], [0], [0], [1], [0, 0, 1, 1], [], []>} : vector<16x128xbf16>, vector<128x128xbf16>, vector<16x128xf32> -> vector<16x128xf32>
    %c0_21 = arith.constant 0 : index
    %c0_22 = arith.constant 0 : index
    %27 = vector.load %arg9[%c0_21, %c0_22] : memref<1x128xf32, #tpu.memory_space<vmem>>, vector<1x128xf32>
    %28 = vector.broadcast %27 : vector<1x128xf32> to vector<16x128xf32>
    %29 = arith.addf %26, %28 : vector<16x128xf32>
    %cst_23 = arith.constant 0.000000e+00 : f32
    %cst_24 = arith.constant 6.000000e+00 : f32
    %30 = vector.broadcast %cst_23 : f32 to vector<16x128xf32>
    %31 = arith.maximumf %30, %29 : vector<16x128xf32>
    %32 = vector.broadcast %cst_24 : f32 to vector<16x128xf32>
    %33 = arith.minimumf %32, %31 : vector<16x128xf32>
    %34 = arith.truncf %33 : vector<16x128xf32> to vector<16x128xbf16>
    %c0_25 = arith.constant 0 : index
    %c0_26 = arith.constant 0 : index
    %35 = vector.load %arg10[%c0_25, %c0_26] : memref<128x128xbf16, #tpu.memory_space<vmem>>, vector<128x128xbf16>
    %cst_27 = arith.constant dense<0.000000e+00> : vector<16x128xf32>
    %36 = tpu.matmul %34, %35, %cst_27 {dimension_numbers = #tpu.dot_dimension_numbers<[1], [0], [0], [1], [0, 0, 1, 1], [], []>} : vector<16x128xbf16>, vector<128x128xbf16>, vector<16x128xf32> -> vector<16x128xf32>
    %c0_28 = arith.constant 0 : index
    %c0_29 = arith.constant 0 : index
    %37 = vector.load %arg11[%c0_28, %c0_29] : memref<1x128xf32, #tpu.memory_space<vmem>>, vector<1x128xf32>
    %38 = vector.broadcast %37 : vector<1x128xf32> to vector<16x128xf32>
    %39 = arith.addf %36, %38 : vector<16x128xf32>
    %cst_30 = arith.constant 0.000000e+00 : f32
    %cst_31 = arith.constant 6.000000e+00 : f32
    %40 = vector.broadcast %cst_30 : f32 to vector<16x128xf32>
    %41 = arith.maximumf %40, %39 : vector<16x128xf32>
    %42 = vector.broadcast %cst_31 : f32 to vector<16x128xf32>
    %43 = arith.minimumf %42, %41 : vector<16x128xf32>
    %44 = arith.truncf %43 : vector<16x128xf32> to vector<16x128xbf16>
    %c0_32 = arith.constant 0 : index
    %c0_33 = arith.constant 0 : index
    %45 = vector.load %arg12[%c0_32, %c0_33] : memref<128x128xbf16, #tpu.memory_space<vmem>>, vector<128x128xbf16>
    %cst_34 = arith.constant dense<0.000000e+00> : vector<16x128xf32>
    %46 = tpu.matmul %44, %45, %cst_34 {dimension_numbers = #tpu.dot_dimension_numbers<[1], [0], [0], [1], [0, 0, 1, 1], [], []>} : vector<16x128xbf16>, vector<128x128xbf16>, vector<16x128xf32> -> vector<16x128xf32>
    %c0_35 = arith.constant 0 : index
    %c0_36 = arith.constant 0 : index
    %47 = vector.load %arg13[%c0_35, %c0_36] : memref<1x128xf32, #tpu.memory_space<vmem>>, vector<1x128xf32>
    %48 = vector.broadcast %47 : vector<1x128xf32> to vector<16x128xf32>
    %49 = arith.addf %46, %48 : vector<16x128xf32>
    %cst_37 = arith.constant 0.000000e+00 : f32
    %cst_38 = arith.constant 6.000000e+00 : f32
    %50 = vector.broadcast %cst_37 : f32 to vector<16x128xf32>
    %51 = arith.maximumf %50, %49 : vector<16x128xf32>
    %52 = vector.broadcast %cst_38 : f32 to vector<16x128xf32>
    %53 = arith.minimumf %52, %51 : vector<16x128xf32>
    %54 = arith.truncf %53 : vector<16x128xf32> to vector<16x128xbf16>
    %c0_39 = arith.constant 0 : index
    %c0_40 = arith.constant 0 : index
    %55 = vector.load %arg14[%c0_39, %c0_40] : memref<128x128xbf16, #tpu.memory_space<vmem>>, vector<128x128xbf16>
    %cst_41 = arith.constant dense<0.000000e+00> : vector<16x128xf32>
    %56 = tpu.matmul %54, %55, %cst_41 {dimension_numbers = #tpu.dot_dimension_numbers<[1], [0], [0], [1], [0, 0, 1, 1], [], []>} : vector<16x128xbf16>, vector<128x128xbf16>, vector<16x128xf32> -> vector<16x128xf32>
    %c0_42 = arith.constant 0 : index
    %c0_43 = arith.constant 0 : index
    %57 = vector.load %arg15[%c0_42, %c0_43] : memref<1x128xf32, #tpu.memory_space<vmem>>, vector<1x128xf32>
    %58 = vector.broadcast %57 : vector<1x128xf32> to vector<16x128xf32>
    %59 = arith.addf %56, %58 : vector<16x128xf32>
    %60 = vector.extract_strided_slice %59 {offsets = [0, 0], sizes = [16, 1], strides = [1, 1]} : vector<16x128xf32> to vector<16x1xf32>
    %61 = arith.negf %60 : vector<16x1xf32>
    %62 = math.exp %61 : vector<16x1xf32>
    %cst_44 = arith.constant 1.000000e+00 : f32
    %63 = vector.broadcast %cst_44 : f32 to vector<16x1xf32>
    %64 = arith.addf %63, %62 : vector<16x1xf32>
    %65 = arith.divf %63, %64 : vector<16x1xf32>
    %c0_45 = arith.constant 0 : index
    %c0_46 = arith.constant 0 : index
    %66 = vector.load %arg16[%c0_45, %c0_46] : memref<16x1xf32, #tpu.memory_space<vmem>>, vector<16x1xf32>
    tpu.vector_store %arg16[%c0_45, %c0_46], %65 {strides = array<i32>} : memref<16x1xf32, #tpu.memory_space<vmem>>, vector<16x1xf32>,
    return
  }
  func.func @transform_0(%arg0: i32) -> (i32, i32) {
    %c0_i32 = arith.constant 0 : i32
    %c0_i32_0 = arith.constant 0 : i32
    return %arg0, %c0_i32 : i32, i32
  }
  func.func @transform_1(%arg0: i32) -> (i32, i32) {
    %c0_i32 = arith.constant 0 : i32
    %c0_i32_0 = arith.constant 0 : i32
    %c0_i32_1 = arith.constant 0 : i32
    return %c0_i32, %c0_i32_0 : i32, i32
  }
  func.func @transform_2(%arg0: i32) -> (i32, i32) {
    %c0_i32 = arith.constant 0 : i32
    %c0_i32_0 = arith.constant 0 : i32
    %c0_i32_1 = arith.constant 0 : i32
    return %c0_i32, %c0_i32_0 : i32, i32
  }
  func.func @transform_3(%arg0: i32) -> (i32, i32) {
    %c0_i32 = arith.constant 0 : i32
    %c0_i32_0 = arith.constant 0 : i32
    %c0_i32_1 = arith.constant 0 : i32
    return %c0_i32, %c0_i32_0 : i32, i32
  }
  func.func @transform_4(%arg0: i32) -> (i32, i32) {
    %c0_i32 = arith.constant 0 : i32
    %c0_i32_0 = arith.constant 0 : i32
    %c0_i32_1 = arith.constant 0 : i32
    return %c0_i32, %c0_i32_0 : i32, i32
  }
  func.func @transform_5(%arg0: i32) -> (i32, i32) {
    %c0_i32 = arith.constant 0 : i32
    %c0_i32_0 = arith.constant 0 : i32
    %c0_i32_1 = arith.constant 0 : i32
    return %c0_i32, %c0_i32_0 : i32, i32
  }
  func.func @transform_6(%arg0: i32) -> (i32, i32) {
    %c0_i32 = arith.constant 0 : i32
    %c0_i32_0 = arith.constant 0 : i32
    %c0_i32_1 = arith.constant 0 : i32
    return %c0_i32, %c0_i32_0 : i32, i32
  }
  func.func @transform_7(%arg0: i32) -> (i32, i32) {
    %c0_i32 = arith.constant 0 : i32
    %c0_i32_0 = arith.constant 0 : i32
    %c0_i32_1 = arith.constant 0 : i32
    return %c0_i32, %c0_i32_0 : i32, i32
  }
  func.func @transform_8(%arg0: i32) -> (i32, i32) {
    %c0_i32 = arith.constant 0 : i32
    %c0_i32_0 = arith.constant 0 : i32
    %c0_i32_1 = arith.constant 0 : i32
    return %c0_i32, %c0_i32_0 : i32, i32
  }
  func.func @transform_9(%arg0: i32) -> (i32, i32) {
    %c0_i32 = arith.constant 0 : i32
    %c0_i32_0 = arith.constant 0 : i32
    %c0_i32_1 = arith.constant 0 : i32
    return %c0_i32, %c0_i32_0 : i32, i32
  }
  func.func @transform_10(%arg0: i32) -> (i32, i32) {
    %c0_i32 = arith.constant 0 : i32
    %c0_i32_0 = arith.constant 0 : i32
    %c0_i32_1 = arith.constant 0 : i32
    return %c0_i32, %c0_i32_0 : i32, i32
  }
  func.func @transform_11(%arg0: i32) -> (i32, i32) {
    %c0_i32 = arith.constant 0 : i32
    %c0_i32_0 = arith.constant 0 : i32
    %c0_i32_1 = arith.constant 0 : i32
    return %c0_i32, %c0_i32_0 : i32, i32
  }
  func.func @transform_12(%arg0: i32) -> (i32, i32) {
    %c0_i32 = arith.constant 0 : i32
    %c0_i32_0 = arith.constant 0 : i32
    %c0_i32_1 = arith.constant 0 : i32
    return %c0_i32, %c0_i32_0 : i32, i32
  }
  func.func @transform_13(%arg0: i32) -> (i32, i32) {
    %c0_i32 = arith.constant 0 : i32
    %c0_i32_0 = arith.constant 0 : i32
    %c0_i32_1 = arith.constant 0 : i32
    return %c0_i32, %c0_i32_0 : i32, i32
  }
  func.func @transform_14(%arg0: i32) -> (i32, i32) {
    %c0_i32 = arith.constant 0 : i32
    %c0_i32_0 = arith.constant 0 : i32
    %c0_i32_1 = arith.constant 0 : i32
    return %c0_i32, %c0_i32_0 : i32, i32
  }
  func.func @transform_15(%arg0: i32) -> (i32, i32) {
    %c0_i32 = arith.constant 0 : i32
    %c0_i32_0 = arith.constant 0 : i32
    return %arg0, %c0_i32 : i32, i32
  }
}

</mosaic_0001>

<llo_original>
// kernel: _ftd_forward_impl.1
$region0: #{_ftd_forward_impl.1}
  #allocation0 [shape = 'u32[]', space=smem, size = 0x4, offset = 0x4, fixed_abs, tag = 'smem constant byte address 0x4 - core index']
  #allocation1 [shape = 'u32[144,128]{1,0:T(1,128)}', space=vmem, size = 0x12000, scoped, tag = 'internal scratch']
  %s0 = inlined_call_operand.vmem [shape: bf16[16,512], index: 0, kind: input, shape index: {}]
  %s1 = inlined_call_operand.hbm [shape: bf16[512,384], index: 1, kind: input, shape index: {}]
  %s2 = inlined_call_operand.vmem [shape: f32[1,384], index: 2, kind: input, shape index: {}]
  %s3 = inlined_call_operand.hbm [shape: bf16[384,256], index: 3, kind: input, shape index: {}]
  %s4 = inlined_call_operand.vmem [shape: f32[1,256], index: 4, kind: input, shape index: {}]
  %s5 = inlined_call_operand.vmem [shape: bf16[256,128], index: 5, kind: input, shape index: {}]
  %s6 = inlined_call_operand.vmem [shape: f32[1,128], index: 6, kind: input, shape index: {}]
  %s7 = inlined_call_operand.hbm [shape: bf16[128,128], index: 7, kind: input, shape index: {}]
  %s8 = inlined_call_operand.vmem [shape: f32[1,128], index: 8, kind: input, shape index: {}]
  %s9 = inlined_call_operand.hbm [shape: bf16[128,128], index: 9, kind: input, shape index: {}]
  %s10 = inlined_call_operand.vmem [shape: f32[1,128], index: 10, kind: input, shape index: {}]
  %s11 = inlined_call_operand.hbm [shape: bf16[128,128], index: 11, kind: input, shape index: {}]
  %s12 = inlined_call_operand.vmem [shape: f32[1,128], index: 12, kind: input, shape index: {}]
  %s13 = inlined_call_operand.hbm [shape: bf16[128,128], index: 13, kind: input, shape index: {}]
  %s14 = inlined_call_operand.vmem [shape: f32[1,128], index: 14, kind: input, shape index: {}]
  %s15 = inlined_call_operand.vmem [shape: f32[16,1], index: 15, kind: output, shape index: {}]
  %s16 = sld [smem:[#allocation0]]
  $region94: #{_ftd_forward_impl.1} parent=0
    _
  %s18 = ssub.s32 1, %s16
  %s19 = scalar_select 0, %s18, %s16
  $region1: #{_ftd_forward_impl.1} parent=0
    #allocation2 [shape = 'u8[393216]{0}', space=vmem, size = 0x60000, scoped, tag = 'input window, operand 1, single buffered']
    #allocation3 [shape = 's32[1]{0}', space=sflag, size = 0x4, scoped, tag = 'scoped memory for _ftd_forward_impl.1']
    #allocation4 [shape = 'u8[196608]{0}', space=vmem, size = 0x30000, scoped, tag = 'input window, operand 3, single buffered']
    #allocation5 [shape = 's32[1]{0}', space=sflag, size = 0x4, scoped, tag = 'scoped memory for _ftd_forward_impl.1']
    #allocation6 [shape = 'u8[32768]{0}', space=vmem, size = 0x8000, scoped, tag = 'input window, operand 7, single buffered']
    #allocation7 [shape = 'u8[32768]{0}', space=vmem, size = 0x8000, scoped, tag = 'input window, operand 9, single buffered']
    #allocation8 [shape = 's32[1]{0}', space=sflag, size = 0x4, scoped, tag = 'scoped memory for _ftd_forward_impl.1']
    #allocation9 [shape = 'u8[32768]{0}', space=vmem, size = 0x8000, scoped, tag = 'input window, operand 11, single buffered']
    #allocation10 [shape = 'u8[32768]{0}', space=vmem, size = 0x8000, scoped, tag = 'input window, operand 13, single buffered']
    #allocation11 [shape = 's32[1]{0}', space=sflag, size = 0x4, scoped, tag = 'scoped memory for _ftd_forward_impl.1']
    %20 = vsyncpa [#allocation3], 0
    %21 = vsyncpa [#allocation5], 0
    %22 = vsyncpa [#allocation8], 0
    %23 = vsyncpa [#allocation11], 0
    // Predicated region
    $region2: #{_ftd_forward_impl.1} parent=1 // pred_check
      _
    $region3: #{_ftd_forward_impl.1} parent=1 // pred_check_branch
      %25 = sbr.rel (0) target = $region5
    $region4: #{_ftd_forward_impl.1} parent=1 // pred_region
      _
    $region5: #{_ftd_forward_impl.1} parent=1 // pred_fallthru
      _
    // Predicated region
    $region6: #{_ftd_forward_impl.1} parent=1 // pred_check
      _
    $region7: #{_ftd_forward_impl.1} parent=1 // pred_check_branch
      %27 = sbr.rel (0) target = $region9
    $region8: #{_ftd_forward_impl.1} parent=1 // pred_region
      %s29 = ssub.s32 12288, 12288
      %30 = vsyncadd [#allocation3], %s29
      %s31 = sshll.u32 [#allocation2], 4
      %s32 = int_to_ptr.vmem [resolvable:$true] %s31
      %37 = dma.hbm_to_vmem [thread:$0]  %s1, 12288, %s32, [#allocation3], 192, 192, 12
    $region9: #{_ftd_forward_impl.1} parent=1 // pred_fallthru
      _
    // Predicated region
    $region10: #{_ftd_forward_impl.1} parent=1 // pred_check
      _
    $region11: #{_ftd_forward_impl.1} parent=1 // pred_check_branch
      %39 = sbr.rel (0) target = $region13
    $region12: #{_ftd_forward_impl.1} parent=1 // pred_region
      _
    $region13: #{_ftd_forward_impl.1} parent=1 // pred_fallthru
      _
    // Predicated region
    $region14: #{_ftd_forward_impl.1} parent=1 // pred_check
      _
    $region15: #{_ftd_forward_impl.1} parent=1 // pred_check_branch
      %41 = sbr.rel (0) target = $region17
    $region16: #{_ftd_forward_impl.1} parent=1 // pred_region
      %s43 = ssub.s32 6144, 6144
      %44 = vsyncadd [#allocation5], %s43
      %s45 = sshll.u32 [#allocation4], 4
      %s46 = int_to_ptr.vmem [resolvable:$true] %s45
      %51 = dma.hbm_to_vmem [thread:$0]  %s3, 6144, %s46, [#allocation5], 128, 128, 8
    $region17: #{_ftd_forward_impl.1} parent=1 // pred_fallthru
      _
    // Predicated region
    $region18: #{_ftd_forward_impl.1} parent=1 // pred_check
      _
    $region19: #{_ftd_forward_impl.1} parent=1 // pred_check_branch
      %53 = sbr.rel (0) target = $region21
    $region20: #{_ftd_forward_impl.1} parent=1 // pred_region
      _
    $region21: #{_ftd_forward_impl.1} parent=1 // pred_fallthru
      _
    // Predicated region
    $region22: #{_ftd_forward_impl.1} parent=1 // pred_check
      _
    $region23: #{_ftd_forward_impl.1} parent=1 // pred_check_branch
      %55 = sbr.rel (0) target = $region25
    $region24: #{_ftd_forward_impl.1} parent=1 // pred_region
      _
    $region25: #{_ftd_forward_impl.1} parent=1 // pred_fallthru
      _
    // Predicated region
    $region26: #{_ftd_forward_impl.1} parent=1 // pred_check
      _
    $region27: #{_ftd_forward_impl.1} parent=1 // pred_check_branch
      %57 = sbr.rel (0) target = $region29
    $region28: #{_ftd_forward_impl.1} parent=1 // pred_region
      _
    $region29: #{_ftd_forward_impl.1} parent=1 // pred_fallthru
      _
    // Predicated region
    $region30: #{_ftd_forward_impl.1} parent=1 // pred_check
      _
    $region31: #{_ftd_forward_impl.1} parent=1 // pred_check_branch
      %59 = sbr.rel (0) target = $region33
    $region32: #{_ftd_forward_impl.1} parent=1 // pred_region
      %s61 = ssub.s32 1024, 1024
      %62 = vsyncadd [#allocation5], %s61
      %s63 = sshll.u32 [#allocation6], 4
      %s64 = int_to_ptr.vmem [resolvable:$true] %s63
      %69 = dma.hbm_to_vmem [thread:$0]  %s7, 1024, %s64, [#allocation5], 64, 64, 4
    $region33: #{_ftd_forward_impl.1} parent=1 // pred_fallthru
      _
    // Predicated region
    $region34: #{_ftd_forward_impl.1} parent=1 // pred_check
      _
    $region35: #{_ftd_forward_impl.1} parent=1 // pred_check_branch
      %71 = sbr.rel (0) target = $region37
    $region36: #{_ftd_forward_impl.1} parent=1 // pred_region
      _
    $region37: #{_ftd_forward_impl.1} parent=1 // pred_fallthru
      _
    // Predicated region
    $region38: #{_ftd_forward_impl.1} parent=1 // pred_check
      _
    $region39: #{_ftd_forward_impl.1} parent=1 // pred_check_branch
      %73 = sbr.rel (0) target = $region41
    $region40: #{_ftd_forward_impl.1} parent=1 // pred_region
      %s75 = ssub.s32 1024, 1024
      %76 = vsyncadd [#allocation8], %s75
      %s77 = sshll.u32 [#allocation7], 4
      %s78 = int_to_ptr.vmem [resolvable:$true] %s77
      %83 = dma.hbm_to_vmem [thread:$0]  %s9, 1024, %s78, [#allocation8], 64, 64, 4
    $region41: #{_ftd_forward_impl.1} parent=1 // pred_fallthru
      _
    // Predicated region
    $region42: #{_ftd_forward_impl.1} parent=1 // pred_check
      _
    $region43: #{_ftd_forward_impl.1} parent=1 // pred_check_branch
      %85 = sbr.rel (0) target = $region45
    $region44: #{_ftd_forward_impl.1} parent=1 // pred_region
      _
    $region45: #{_ftd_forward_impl.1} parent=1 // pred_fallthru
      _
    // Predicated region
    $region46: #{_ftd_forward_impl.1} parent=1 // pred_check
      _
    $region47: #{_ftd_forward_impl.1} parent=1 // pred_check_branch
      %87 = sbr.rel (0) target = $region49
    $region48: #{_ftd_forward_impl.1} parent=1 // pred_region
      %s89 = ssub.s32 1024, 1024
      %90 = vsyncadd [#allocation8], %s89
      %s91 = sshll.u32 [#allocation9], 4
      %s92 = int_to_ptr.vmem [resolvable:$true] %s91
      %97 = dma.hbm_to_vmem [thread:$0]  %s11, 1024, %s92, [#allocation8], 64, 64, 4
    $region49: #{_ftd_forward_impl.1} parent=1 // pred_fallthru
      _
    // Predicated region
    $region50: #{_ftd_forward_impl.1} parent=1 // pred_check
      _
    $region51: #{_ftd_forward_impl.1} parent=1 // pred_check_branch
      %99 = sbr.rel (0) target = $region53
    $region52: #{_ftd_forward_impl.1} parent=1 // pred_region
      _
    $region53: #{_ftd_forward_impl.1} parent=1 // pred_fallthru
      _
    // Predicated region
    $region54: #{_ftd_forward_impl.1} parent=1 // pred_check
      _
    $region55: #{_ftd_forward_impl.1} parent=1 // pred_check_branch
      %101 = sbr.rel (0) target = $region57
    $region56: #{_ftd_forward_impl.1} parent=1 // pred_region
      %s103 = ssub.s32 1024, 1024
      %104 = vsyncadd [#allocation11], %s103
      %s105 = sshll.u32 [#allocation10], 4
      %s106 = int_to_ptr.vmem [resolvable:$true] %s105
      %111 = dma.hbm_to_vmem [thread:$0]  %s13, 1024, %s106, [#allocation11], 64, 64, 4
    $region57: #{_ftd_forward_impl.1} parent=1 // pred_fallthru
      _
    // Predicated region
    $region58: #{_ftd_forward_impl.1} parent=1 // pred_check
      _
    $region59: #{_ftd_forward_impl.1} parent=1 // pred_check_branch
      %113 = sbr.rel (0) target = $region61
    $region60: #{_ftd_forward_impl.1} parent=1 // pred_region
      _
    $region61: #{_ftd_forward_impl.1} parent=1 // pred_fallthru
      _
    // Predicated region
    $region62: #{_ftd_forward_impl.1} parent=1 // pred_check
      _
    $region63: #{_ftd_forward_impl.1} parent=1 // pred_check_branch
      %115 = sbr.rel (0) target = $region65
    $region64: #{_ftd_forward_impl.1} parent=1 // pred_region
      %116 = dma.done [#allocation3], 12288
    $region65: #{_ftd_forward_impl.1} parent=1 // pred_fallthru
      _
    // Predicated region
    $region66: #{_ftd_forward_impl.1} parent=1 // pred_check
      _
    $region67: #{_ftd_forward_impl.1} parent=1 // pred_check_branch
      %118 = sbr.rel (0) target = $region69
    $region68: #{_ftd_forward_impl.1} parent=1 // pred_region
      %119 = dma.done [#allocation5], 6144
    $region69: #{_ftd_forward_impl.1} parent=1 // pred_fallthru
      _
    // Predicated region
    $region70: #{_ftd_forward_impl.1} parent=1 // pred_check
      _
    $region71: #{_ftd_forward_impl.1} parent=1 // pred_check_branch
      %121 = sbr.rel (0) target = $region73
    $region72: #{_ftd_forward_impl.1} parent=1 // pred_region
      %122 = dma.done [#allocation5], 1024
    $region73: #{_ftd_forward_impl.1} parent=1 // pred_fallthru
      _
    // Predicated region
    $region74: #{_ftd_forward_impl.1} parent=1 // pred_check
      _
    $region75: #{_ftd_forward_impl.1} parent=1 // pred_check_branch
      %124 = sbr.rel (0) target = $region77
    $region76: #{_ftd_forward_impl.1} parent=1 // pred_region
      %125 = dma.done [#allocation8], 1024
    $region77: #{_ftd_forward_impl.1} parent=1 // pred_fallthru
      _
    // Predicated region
    $region78: #{_ftd_forward_impl.1} parent=1 // pred_check
      _
    $region79: #{_ftd_forward_impl.1} parent=1 // pred_check_branch
      %127 = sbr.rel (0) target = $region81
    $region80: #{_ftd_forward_impl.1} parent=1 // pred_region
      %128 = dma.done [#allocation8], 1024
    $region81: #{_ftd_forward_impl.1} parent=1 // pred_fallthru
      _
    // Predicated region
    $region82: #{_ftd_forward_impl.1} parent=1 // pred_check
      _
    $region83: #{_ftd_forward_impl.1} parent=1 // pred_check_branch
      %130 = sbr.rel (0) target = $region85
    $region84: #{_ftd_forward_impl.1} parent=1 // pred_region
      %131 = dma.done [#allocation11], 1024
    $region85: #{_ftd_forward_impl.1} parent=1 // pred_fallthru
      _
    %v133 = vld [vmem:[%s0] sm:$0xff]
    %v134 = vld [vmem:[%s0 + $0x8] sm:$0xff]
    %v135 = vld [vmem:[%s0 + $0x10] sm:$0xff]
    %v136 = vld [vmem:[%s0 + $0x18] sm:$0xff]
    %v137 = vld [vmem:[#allocation2] sm:$0xff]
    %v138 = vld [vmem:[#allocation2 + $0x8] sm:$0xf]
    %v139 = vld [vmem:[#allocation2 + $0xc] sm:$0xff]
    %v140 = vld [vmem:[#allocation2 + $0x14] sm:$0xf]
    %v141 = vld [vmem:[#allocation2 + $0x18] sm:$0xff]
    %v142 = vld [vmem:[#allocation2 + $0x20] sm:$0xf]
    %v143 = vld [vmem:[#allocation2 + $0x24] sm:$0xff]
    %v144 = vld [vmem:[#allocation2 + $0x2c] sm:$0xf]
    %v145 = vld [vmem:[#allocation2 + $0x30] sm:$0xff]
    %v146 = vld [vmem:[#allocation2 + $0x38] sm:$0xf]
    %v147 = vld [vmem:[#allocation2 + $0x3c] sm:$0xff]
    %v148 = vld [vmem:[#allocation2 + $0x44] sm:$0xf]
    %v149 = vld [vmem:[#allocation2 + $0x48] sm:$0xff]
    %v150 = vld [vmem:[#allocation2 + $0x50] sm:$0xf]
    %v151 = vld [vmem:[#allocation2 + $0x54] sm:$0xff]
    %v152 = vld [vmem:[#allocation2 + $0x5c] sm:$0xf]
    %v153 = vld [vmem:[#allocation2 + $0x60] sm:$0xff]
    %v154 = vld [vmem:[#allocation2 + $0x68] sm:$0xf]
    %v155 = vld [vmem:[#allocation2 + $0x6c] sm:$0xff]
    %v156 = vld [vmem:[#allocation2 + $0x74] sm:$0xf]
    %v157 = vld [vmem:[#allocation2 + $0x78] sm:$0xff]
    %v158 = vld [vmem:[#allocation2 + $0x80] sm:$0xf]
    %v159 = vld [vmem:[#allocation2 + $0x84] sm:$0xff]
    %v160 = vld [vmem:[#allocation2 + $0x8c] sm:$0xf]
    %v161 = vld [vmem:[#allocation2 + $0x90] sm:$0xff]
    %v162 = vld [vmem:[#allocation2 + $0x98] sm:$0xf]
    %v163 = vld [vmem:[#allocation2 + $0x9c] sm:$0xff]
    %v164 = vld [vmem:[#allocation2 + $0xa4] sm:$0xf]
    %v165 = vld [vmem:[#allocation2 + $0xa8] sm:$0xff]
    %v166 = vld [vmem:[#allocation2 + $0xb0] sm:$0xf]
    %v167 = vld [vmem:[#allocation2 + $0xb4] sm:$0xff]
    %v168 = vld [vmem:[#allocation2 + $0xbc] sm:$0xf]
    %v169 = vld [vmem:[#allocation2 + $0xc0] sm:$0xff]
    %v170 = vld [vmem:[#allocation2 + $0xc8] sm:$0xf]
    %v171 = vld [vmem:[#allocation2 + $0xcc] sm:$0xff]
    %v172 = vld [vmem:[#allocation2 + $0xd4] sm:$0xf]
    %v173 = vld [vmem:[#allocation2 + $0xd8] sm:$0xff]
    %v174 = vld [vmem:[#allocation2 + $0xe0] sm:$0xf]
    %v175 = vld [vmem:[#allocation2 + $0xe4] sm:$0xff]
    %v176 = vld [vmem:[#allocation2 + $0xec] sm:$0xf]
    %v177 = vld [vmem:[#allocation2 + $0xf0] sm:$0xff]
    %v178 = vld [vmem:[#allocation2 + $0xf8] sm:$0xf]
    %v179 = vld [vmem:[#allocation2 + $0xfc] sm:$0xff]
    %v180 = vld [vmem:[#allocation2 + $0x104] sm:$0xf]
    %v181 = vld [vmem:[#allocation2 + $0x108] sm:$0xff]
    %v182 = vld [vmem:[#allocation2 + $0x110] sm:$0xf]
    %v183 = vld [vmem:[#allocation2 + $0x114] sm:$0xff]
    %v184 = vld [vmem:[#allocation2 + $0x11c] sm:$0xf]
    %v185 = vld [vmem:[#allocation2 + $0x120] sm:$0xff]
    %v186 = vld [vmem:[#allocation2 + $0x128] sm:$0xf]
    %v187 = vld [vmem:[#allocation2 + $0x12c] sm:$0xff]
    %v188 = vld [vmem:[#allocation2 + $0x134] sm:$0xf]
    %v189 = vld [vmem:[#allocation2 + $0x138] sm:$0xff]
    %v190 = vld [vmem:[#allocation2 + $0x140] sm:$0xf]
    %v191 = vld [vmem:[#allocation2 + $0x144] sm:$0xff]
    %v192 = vld [vmem:[#allocation2 + $0x14c] sm:$0xf]
    %v193 = vld [vmem:[#allocation2 + $0x150] sm:$0xff]
    %v194 = vld [vmem:[#allocation2 + $0x158] sm:$0xf]
    %v195 = vld [vmem:[#allocation2 + $0x15c] sm:$0xff]
    %v196 = vld [vmem:[#allocation2 + $0x164] sm:$0xf]
    %v197 = vld [vmem:[#allocation2 + $0x168] sm:$0xff]
    %v198 = vld [vmem:[#allocation2 + $0x170] sm:$0xf]
    %v199 = vld [vmem:[#allocation2 + $0x174] sm:$0xff]
    %v200 = vld [vmem:[#allocation2 + $0x17c] sm:$0xf]
    %v201 = vld [vmem:[#allocation2 + $0x180] sm:$0xff]
    %v202 = vld [vmem:[#allocation2 + $0x188] sm:$0xf]
    %v203 = vld [vmem:[#allocation2 + $0x18c] sm:$0xff]
    %v204 = vld [vmem:[#allocation2 + $0x194] sm:$0xf]
    %v205 = vld [vmem:[#allocation2 + $0x198] sm:$0xff]
    %v206 = vld [vmem:[#allocation2 + $0x1a0] sm:$0xf]
    %v207 = vld [vmem:[#allocation2 + $0x1a4] sm:$0xff]
    %v208 = vld [vmem:[#allocation2 + $0x1ac] sm:$0xf]
    %v209 = vld [vmem:[#allocation2 + $0x1b0] sm:$0xff]
    %v210 = vld [vmem:[#allocation2 + $0x1b8] sm:$0xf]
    %v211 = vld [vmem:[#allocation2 + $0x1bc] sm:$0xff]
    %v212 = vld [vmem:[#allocation2 + $0x1c4] sm:$0xf]
    %v213 = vld [vmem:[#allocation2 + $0x1c8] sm:$0xff]
    %v214 = vld [vmem:[#allocation2 + $0x1d0] sm:$0xf]
    %v215 = vld [vmem:[#allocation2 + $0x1d4] sm:$0xff]
    %v216 = vld [vmem:[#allocation2 + $0x1dc] sm:$0xf]
    %v217 = vld [vmem:[#allocation2 + $0x1e0] sm:$0xff]
    %v218 = vld [vmem:[#allocation2 + $0x1e8] sm:$0xf]
    %v219 = vld [vmem:[#allocation2 + $0x1ec] sm:$0xff]
    %v220 = vld [vmem:[#allocation2 + $0x1f4] sm:$0xf]
    %v221 = vld [vmem:[#allocation2 + $0x1f8] sm:$0xff]
    %v222 = vld [vmem:[#allocation2 + $0x200] sm:$0xf]
    %v223 = vld [vmem:[#allocation2 + $0x204] sm:$0xff]
    %v224 = vld [vmem:[#allocation2 + $0x20c] sm:$0xf]
    %v225 = vld [vmem:[#allocation2 + $0x210] sm:$0xff]
    %v226 = vld [vmem:[#allocation2 + $0x218] sm:$0xf]
    %v227 = vld [vmem:[#allocation2 + $0x21c] sm:$0xff]
    %v228 = vld [vmem:[#allocation2 + $0x224] sm:$0xf]
    %v229 = vld [vmem:[#allocation2 + $0x228] sm:$0xff]
    %v230 = vld [vmem:[#allocation2 + $0x230] sm:$0xf]
    %v231 = vld [vmem:[#allocation2 + $0x234] sm:$0xff]
    %v232 = vld [vmem:[#allocation2 + $0x23c] sm:$0xf]
    %v233 = vld [vmem:[#allocation2 + $0x240] sm:$0xff]
    %v234 = vld [vmem:[#allocation2 + $0x248] sm:$0xf]
    %v235 = vld [vmem:[#allocation2 + $0x24c] sm:$0xff]
    %v236 = vld [vmem:[#allocation2 + $0x254] sm:$0xf]
    %v237 = vld [vmem:[#allocation2 + $0x258] sm:$0xff]
    %v238 = vld [vmem:[#allocation2 + $0x260] sm:$0xf]
    %v239 = vld [vmem:[#allocation2 + $0x264] sm:$0xff]
    %v240 = vld [vmem:[#allocation2 + $0x26c] sm:$0xf]
    %v241 = vld [vmem:[#allocation2 + $0x270] sm:$0xff]
    %v242 = vld [vmem:[#allocation2 + $0x278] sm:$0xf]
    %v243 = vld [vmem:[#allocation2 + $0x27c] sm:$0xff]
    %v244 = vld [vmem:[#allocation2 + $0x284] sm:$0xf]
    %v245 = vld [vmem:[#allocation2 + $0x288] sm:$0xff]
    %v246 = vld [vmem:[#allocation2 + $0x290] sm:$0xf]
    %v247 = vld [vmem:[#allocation2 + $0x294] sm:$0xff]
    %v248 = vld [vmem:[#allocation2 + $0x29c] sm:$0xf]
    %v249 = vld [vmem:[#allocation2 + $0x2a0] sm:$0xff]
    %v250 = vld [vmem:[#allocation2 + $0x2a8] sm:$0xf]
    %v251 = vld [vmem:[#allocation2 + $0x2ac] sm:$0xff]
    %v252 = vld [vmem:[#allocation2 + $0x2b4] sm:$0xf]
    %v253 = vld [vmem:[#allocation2 + $0x2b8] sm:$0xff]
    %v254 = vld [vmem:[#allocation2 + $0x2c0] sm:$0xf]
    %v255 = vld [vmem:[#allocation2 + $0x2c4] sm:$0xff]
    %v256 = vld [vmem:[#allocation2 + $0x2cc] sm:$0xf]
    %v257 = vld [vmem:[#allocation2 + $0x2d0] sm:$0xff]
    %v258 = vld [vmem:[#allocation2 + $0x2d8] sm:$0xf]
    %v259 = vld [vmem:[#allocation2 + $0x2dc] sm:$0xff]
    %v260 = vld [vmem:[#allocation2 + $0x2e4] sm:$0xf]
    %v261 = vld [vmem:[#allocation2 + $0x2e8] sm:$0xff]
    %v262 = vld [vmem:[#allocation2 + $0x2f0] sm:$0xf]
    %v263 = vld [vmem:[#allocation2 + $0x2f4] sm:$0xff]
    %v264 = vld [vmem:[#allocation2 + $0x2fc] sm:$0xf]
    %v265 = vld [vmem:[%s2] sm:$0x7]
    %v267 = vlaneseq
    %v268 = vshrl.u32 %v267, 7
    %v269 = vsub.s32 0, %v268
    %v270 = vrot.slane %v265, %v269
    %v271 = vlaneseq
    %v272 = vshrl.u32 %v271, 7
    %v273 = vsub.s32 1, %v272
    %v274 = vrot.slane %v265, %v273
    %v275 = vlaneseq
    %v276 = vshrl.u32 %v275, 7
    %v277 = vsub.s32 2, %v276
    %v278 = vrot.slane %v265, %v277
    %v286 = vunpack.c.l.b16 %v133
    %v287 = vunpack.c.h.b16 %v133
    %v288 = vunpack.c.l.b16 %v134
    %v289 = vunpack.c.h.b16 %v134
    %v290 = vunpack.c.l.b16 %v135
    %v291 = vunpack.c.h.b16 %v135
    %v292 = vunpack.c.l.b16 %v136
    %v293 = vunpack.c.h.b16 %v136
    %v294 = vpack.c.b16 %v290, %v286
    %v295 = vpack.c.b16 %v291, %v287
    %v296 = vpack.c.b16 %v292, %v288
    %v297 = vpack.c.b16 %v293, %v289
    %v430 = vunpack.c.l.b16 %v137
    %v431 = vunpack.c.h.b16 %v137
    %v432 = vunpack.c.l.b16 %v138
    %v433 = vunpack.c.l.b16 %v139
    %v434 = vunpack.c.h.b16 %v139
    %v435 = vunpack.c.l.b16 %v140
    %v436 = vunpack.c.l.b16 %v141
    %v437 = vunpack.c.h.b16 %v141
    %v438 = vunpack.c.l.b16 %v142
    %v439 = vunpack.c.l.b16 %v143
    %v440 = vunpack.c.h.b16 %v143
    %v441 = vunpack.c.l.b16 %v144
    %v442 = vunpack.c.l.b16 %v145
    %v443 = vunpack.c.h.b16 %v145
    %v444 = vunpack.c.l.b16 %v146
    %v445 = vunpack.c.l.b16 %v147
    %v446 = vunpack.c.h.b16 %v147
    %v447 = vunpack.c.l.b16 %v148
    %v448 = vunpack.c.l.b16 %v149
    %v449 = vunpack.c.h.b16 %v149
    %v450 = vunpack.c.l.b16 %v150
    %v451 = vunpack.c.l.b16 %v151
    %v452 = vunpack.c.h.b16 %v151
    %v453 = vunpack.c.l.b16 %v152
    %v454 = vunpack.c.l.b16 %v153
    %v455 = vunpack.c.h.b16 %v153
    %v456 = vunpack.c.l.b16 %v154
    %v457 = vunpack.c.l.b16 %v155
    %v458 = vunpack.c.h.b16 %v155
    %v459 = vunpack.c.l.b16 %v156
    %v460 = vunpack.c.l.b16 %v157
    %v461 = vunpack.c.h.b16 %v157
    %v462 = vunpack.c.l.b16 %v158
    %v463 = vunpack.c.l.b16 %v159
    %v464 = vunpack.c.h.b16 %v159
    %v465 = vunpack.c.l.b16 %v160
    %v466 = vunpack.c.l.b16 %v161
    %v467 = vunpack.c.h.b16 %v161
    %v468 = vunpack.c.l.b16 %v162
    %v469 = vunpack.c.l.b16 %v163
    %v470 = vunpack.c.h.b16 %v163
    %v471 = vunpack.c.l.b16 %v164
    %v472 = vunpack.c.l.b16 %v165
    %v473 = vunpack.c.h.b16 %v165
    %v474 = vunpack.c.l.b16 %v166
    %v475 = vunpack.c.l.b16 %v167
    %v476 = vunpack.c.h.b16 %v167
    %v477 = vunpack.c.l.b16 %v168
    %v478 = vunpack.c.l.b16 %v169
    %v479 = vunpack.c.h.b16 %v169
    %v480 = vunpack.c.l.b16 %v170
    %v481 = vunpack.c.l.b16 %v171
    %v482 = vunpack.c.h.b16 %v171
    %v483 = vunpack.c.l.b16 %v172
    %v484 = vunpack.c.l.b16 %v173
    %v485 = vunpack.c.h.b16 %v173
    %v486 = vunpack.c.l.b16 %v174
    %v487 = vunpack.c.l.b16 %v175
    %v488 = vunpack.c.h.b16 %v175
    %v489 = vunpack.c.l.b16 %v176
    %v490 = vunpack.c.l.b16 %v177
    %v491 = vunpack.c.h.b16 %v177
    %v492 = vunpack.c.l.b16 %v178
    %v493 = vunpack.c.l.b16 %v179
    %v494 = vunpack.c.h.b16 %v179
    %v495 = vunpack.c.l.b16 %v180
    %v496 = vunpack.c.l.b16 %v181
    %v497 = vunpack.c.h.b16 %v181
    %v498 = vunpack.c.l.b16 %v182
    %v499 = vunpack.c.l.b16 %v183
    %v500 = vunpack.c.h.b16 %v183
    %v501 = vunpack.c.l.b16 %v184
    %v502 = vunpack.c.l.b16 %v185
    %v503 = vunpack.c.h.b16 %v185
    %v504 = vunpack.c.l.b16 %v186
    %v505 = vunpack.c.l.b16 %v187
    %v506 = vunpack.c.h.b16 %v187
    %v507 = vunpack.c.l.b16 %v188
    %v508 = vunpack.c.l.b16 %v189
    %v509 = vunpack.c.h.b16 %v189
    %v510 = vunpack.c.l.b16 %v190
    %v511 = vunpack.c.l.b16 %v191
    %v512 = vunpack.c.h.b16 %v191
    %v513 = vunpack.c.l.b16 %v192
    %v514 = vunpack.c.l.b16 %v193
    %v515 = vunpack.c.h.b16 %v193
    %v516 = vunpack.c.l.b16 %v194
    %v517 = vunpack.c.l.b16 %v195
    %v518 = vunpack.c.h.b16 %v195
    %v519 = vunpack.c.l.b16 %v196
    %v520 = vunpack.c.l.b16 %v197
    %v521 = vunpack.c.h.b16 %v197
    %v522 = vunpack.c.l.b16 %v198
    %v523 = vunpack.c.l.b16 %v199
    %v524 = vunpack.c.h.b16 %v199
    %v525 = vunpack.c.l.b16 %v200
    %v526 = vunpack.c.l.b16 %v201
    %v527 = vunpack.c.h.b16 %v201
    %v528 = vunpack.c.l.b16 %v202
    %v529 = vunpack.c.l.b16 %v203
    %v530 = vunpack.c.h.b16 %v203
    %v531 = vunpack.c.l.b16 %v204
    %v532 = vunpack.c.l.b16 %v205
    %v533 = vunpack.c.h.b16 %v205
    %v534 = vunpack.c.l.b16 %v206
    %v535 = vunpack.c.l.b16 %v207
    %v536 = vunpack.c.h.b16 %v207
    %v537 = vunpack.c.l.b16 %v208
    %v538 = vunpack.c.l.b16 %v209
    %v539 = vunpack.c.h.b16 %v209
    %v540 = vunpack.c.l.b16 %v210
    %v541 = vunpack.c.l.b16 %v211
    %v542 = vunpack.c.h.b16 %v211
    %v543 = vunpack.c.l.b16 %v212
    %v544 = vunpack.c.l.b16 %v213
    %v545 = vunpack.c.h.b16 %v213
    %v546 = vunpack.c.l.b16 %v214
    %v547 = vunpack.c.l.b16 %v215
    %v548 = vunpack.c.h.b16 %v215
    %v549 = vunpack.c.l.b16 %v216
    %v550 = vunpack.c.l.b16 %v217
    %v551 = vunpack.c.h.b16 %v217
    %v552 = vunpack.c.l.b16 %v218
    %v553 = vunpack.c.l.b16 %v219
    %v554 = vunpack.c.h.b16 %v219
    %v555 = vunpack.c.l.b16 %v220
    %v556 = vunpack.c.l.b16 %v221
    %v557 = vunpack.c.h.b16 %v221
    %v558 = vunpack.c.l.b16 %v222
    %v559 = vunpack.c.l.b16 %v223
    %v560 = vunpack.c.h.b16 %v223
    %v561 = vunpack.c.l.b16 %v224
    %v562 = vunpack.c.l.b16 %v225
    %v563 = vunpack.c.h.b16 %v225
    %v564 = vunpack.c.l.b16 %v226
    %v565 = vunpack.c.l.b16 %v227
    %v566 = vunpack.c.h.b16 %v227
    %v567 = vunpack.c.l.b16 %v228
    %v568 = vunpack.c.l.b16 %v229
    %v569 = vunpack.c.h.b16 %v229
    %v570 = vunpack.c.l.b16 %v230
    %v571 = vunpack.c.l.b16 %v231
    %v572 = vunpack.c.h.b16 %v231
    %v573 = vunpack.c.l.b16 %v232
    %v574 = vunpack.c.l.b16 %v233
    %v575 = vunpack.c.h.b16 %v233
    %v576 = vunpack.c.l.b16 %v234
    %v577 = vunpack.c.l.b16 %v235
    %v578 = vunpack.c.h.b16 %v235
    %v579 = vunpack.c.l.b16 %v236
    %v580 = vunpack.c.l.b16 %v237
    %v581 = vunpack.c.h.b16 %v237
    %v582 = vunpack.c.l.b16 %v238
    %v583 = vunpack.c.l.b16 %v239
    %v584 = vunpack.c.h.b16 %v239
    %v585 = vunpack.c.l.b16 %v240
    %v586 = vunpack.c.l.b16 %v241
    %v587 = vunpack.c.h.b16 %v241
    %v588 = vunpack.c.l.b16 %v242
    %v589 = vunpack.c.l.b16 %v243
    %v590 = vunpack.c.h.b16 %v243
    %v591 = vunpack.c.l.b16 %v244
    %v592 = vunpack.c.l.b16 %v245
    %v593 = vunpack.c.h.b16 %v245
    %v594 = vunpack.c.l.b16 %v246
    %v595 = vunpack.c.l.b16 %v247
    %v596 = vunpack.c.h.b16 %v247
    %v597 = vunpack.c.l.b16 %v248
    %v598 = vunpack.c.l.b16 %v249
    %v599 = vunpack.c.h.b16 %v249
    %v600 = vunpack.c.l.b16 %v250
    %v601 = vunpack.c.l.b16 %v251
    %v602 = vunpack.c.h.b16 %v251
    %v603 = vunpack.c.l.b16 %v252
    %v604 = vunpack.c.l.b16 %v253
    %v605 = vunpack.c.h.b16 %v253
    %v606 = vunpack.c.l.b16 %v254
    %v607 = vunpack.c.l.b16 %v255
    %v608 = vunpack.c.h.b16 %v255
    %v609 = vunpack.c.l.b16 %v256
    %v610 = vunpack.c.l.b16 %v257
    %v611 = vunpack.c.h.b16 %v257
    %v612 = vunpack.c.l.b16 %v258
    %v613 = vunpack.c.l.b16 %v259
    %v614 = vunpack.c.h.b16 %v259
    %v615 = vunpack.c.l.b16 %v260
    %v616 = vunpack.c.l.b16 %v261
    %v617 = vunpack.c.h.b16 %v261
    %v618 = vunpack.c.l.b16 %v262
    %v619 = vunpack.c.l.b16 %v263
    %v620 = vunpack.c.h.b16 %v263
    %v621 = vunpack.c.l.b16 %v264
    %v622 = vpack.c.b16 %v433, %v430
    %v623 = vpack.c.b16 %v434, %v431
    %v624 = vpack.c.b16 %v435, %v432
    %v625 = vpack.c.b16 %v439, %v436
    %v626 = vpack.c.b16 %v440, %v437
    %v627 = vpack.c.b16 %v441, %v438
    %v628 = vpack.c.b16 %v445, %v442
    %v629 = vpack.c.b16 %v446, %v443
    %v630 = vpack.c.b16 %v447, %v444
    %v631 = vpack.c.b16 %v451, %v448
    %v632 = vpack.c.b16 %v452, %v449
    %v633 = vpack.c.b16 %v453, %v450
    %v634 = vpack.c.b16 %v457, %v454
    %v635 = vpack.c.b16 %v458, %v455
    %v636 = vpack.c.b16 %v459, %v456
    %v637 = vpack.c.b16 %v463, %v460
    %v638 = vpack.c.b16 %v464, %v461
    %v639 = vpack.c.b16 %v465, %v462
    %v640 = vpack.c.b16 %v469, %v466
    %v641 = vpack.c.b16 %v470, %v467
    %v642 = vpack.c.b16 %v471, %v468
    %v643 = vpack.c.b16 %v475, %v472
    %v644 = vpack.c.b16 %v476, %v473
    %v645 = vpack.c.b16 %v477, %v474
    %v646 = vpack.c.b16 %v481, %v478
    %v647 = vpack.c.b16 %v482, %v479
    %v648 = vpack.c.b16 %v483, %v480
    %v649 = vpack.c.b16 %v487, %v484
    %v650 = vpack.c.b16 %v488, %v485
    %v651 = vpack.c.b16 %v489, %v486
    %v652 = vpack.c.b16 %v493, %v490
    %v653 = vpack.c.b16 %v494, %v491
    %v654 = vpack.c.b16 %v495, %v492
    %v655 = vpack.c.b16 %v499, %v496
    %v656 = vpack.c.b16 %v500, %v497
    %v657 = vpack.c.b16 %v501, %v498
    %v658 = vpack.c.b16 %v505, %v502
    %v659 = vpack.c.b16 %v506, %v503
    %v660 = vpack.c.b16 %v507, %v504
    %v661 = vpack.c.b16 %v511, %v508
    %v662 = vpack.c.b16 %v512, %v509
    %v663 = vpack.c.b16 %v513, %v510
    %v664 = vpack.c.b16 %v517, %v514
    %v665 = vpack.c.b16 %v518, %v515
    %v666 = vpack.c.b16 %v519, %v516
    %v667 = vpack.c.b16 %v523, %v520
    %v668 = vpack.c.b16 %v524, %v521
    %v669 = vpack.c.b16 %v525, %v522
    %v670 = vpack.c.b16 %v529, %v526
    %v671 = vpack.c.b16 %v530, %v527
    %v672 = vpack.c.b16 %v531, %v528
    %v673 = vpack.c.b16 %v535, %v532
    %v674 = vpack.c.b16 %v536, %v533
    %v675 = vpack.c.b16 %v537, %v534
    %v676 = vpack.c.b16 %v541, %v538
    %v677 = vpack.c.b16 %v542, %v539
    %v678 = vpack.c.b16 %v543, %v540
    %v679 = vpack.c.b16 %v547, %v544
    %v680 = vpack.c.b16 %v548, %v545
    %v681 = vpack.c.b16 %v549, %v546
    %v682 = vpack.c.b16 %v553, %v550
    %v683 = vpack.c.b16 %v554, %v551
    %v684 = vpack.c.b16 %v555, %v552
    %v685 = vpack.c.b16 %v559, %v556
    %v686 = vpack.c.b16 %v560, %v557
    %v687 = vpack.c.b16 %v561, %v558
    %v688 = vpack.c.b16 %v565, %v562
    %v689 = vpack.c.b16 %v566, %v563
    %v690 = vpack.c.b16 %v567, %v564
    %v691 = vpack.c.b16 %v571, %v568
    %v692 = vpack.c.b16 %v572, %v569
    %v693 = vpack.c.b16 %v573, %v570
    %v694 = vpack.c.b16 %v577, %v574
    %v695 = vpack.c.b16 %v578, %v575
    %v696 = vpack.c.b16 %v579, %v576
    %v697 = vpack.c.b16 %v583, %v580
    %v698 = vpack.c.b16 %v584, %v581
    %v699 = vpack.c.b16 %v585, %v582
    %v700 = vpack.c.b16 %v589, %v586
    %v701 = vpack.c.b16 %v590, %v587
    %v702 = vpack.c.b16 %v591, %v588
    %v703 = vpack.c.b16 %v595, %v592
    %v704 = vpack.c.b16 %v596, %v593
    %v705 = vpack.c.b16 %v597, %v594
    %v706 = vpack.c.b16 %v601, %v598
    %v707 = vpack.c.b16 %v602, %v599
    %v708 = vpack.c.b16 %v603, %v600
    %v709 = vpack.c.b16 %v607, %v604
    %v710 = vpack.c.b16 %v608, %v605
    %v711 = vpack.c.b16 %v609, %v606
    %v712 = vpack.c.b16 %v613, %v610
    %v713 = vpack.c.b16 %v614, %v611
    %v714 = vpack.c.b16 %v615, %v612
    %v715 = vpack.c.b16 %v619, %v616
    %v716 = vpack.c.b16 %v620, %v617
    %v717 = vpack.c.b16 %v621, %v618
    %814 = vmatprep.subr.bf16.mxu0 %v623
    %815 = vmatpush1.bf16.msra.mxu0 %v622
    %816 = vmatprep.subr.bf16.mxu0 %v626
    %817 = vmatpush1.bf16.msra.mxu0 %v625
    %818 = vmatprep.subr.bf16.mxu0 %v629
    %819 = vmatpush1.bf16.msra.mxu0 %v628
    %820 = vmatprep.subr.bf16.mxu0 %v632
    %821 = vmatpush1.bf16.msra.mxu0 %v631
    %822 = vmatprep.subr.bf16.mxu0 %v635
    %823 = vmatpush1.bf16.msra.mxu0 %v634
    %824 = vmatprep.subr.bf16.mxu0 %v638
    %825 = vmatpush1.bf16.msra.mxu0 %v637
    %826 = vmatprep.subr.bf16.mxu0 %v641
    %827 = vmatpush1.bf16.msra.mxu0 %v640
    %828 = vmatprep.subr.bf16.mxu0 %v644
    %829 = vmatpush1.bf16.msra.mxu0 %v643
    %830 = vmatprep.subr.bf16.mxu0 %v647
    %831 = vmatpush1.bf16.msra.mxu0 %v646
    %832 = vmatprep.subr.bf16.mxu0 %v650
    %833 = vmatpush1.bf16.msra.mxu0 %v649
    %834 = vmatprep.subr.bf16.mxu0 %v653
    %835 = vmatpush1.bf16.msra.mxu0 %v652
    %836 = vmatprep.subr.bf16.mxu0 %v656
    %837 = vmatpush1.bf16.msra.mxu0 %v655
    %838 = vmatprep.subr.bf16.mxu0 %v659
    %839 = vmatpush1.bf16.msra.mxu0 %v658
    %840 = vmatprep.subr.bf16.mxu0 %v662
    %841 = vmatpush1.bf16.msra.mxu0 %v661
    %842 = vmatprep.subr.bf16.mxu0 %v665
    %843 = vmatpush1.bf16.msra.mxu0 %v664
    %844 = vmatprep.subr.bf16.mxu0 %v668
    %845 = vmatpush1.bf16.msra.mxu0 %v667
    %846 = vmatprep.mubr.bf16.mxu0 %v295
    %847 = vmatmul.mubr.bf16.gmra.mrb[0].mxu0 %v294
    %v848 = vpop.f32.mrb[0].mxu0
    %v849 = vadd.f32 %v270, %v848
    %v850 = vpop.f32.mrb[0].mxu0
    %v851 = vadd.f32 %v274, %v850
    %v852 = vpop.f32.mrb[0].mxu0
    %v853 = vadd.f32 %v270, %v852
    %v854 = vpop.f32.mrb[0].mxu0
    %v855 = vadd.f32 %v274, %v854
    %856 = vdwg.mxu0
    %857 = vmatprep.subr.bf16.mxu0 %v671
    %858 = vmatpush1.bf16.msra.mxu0 %v670
    %859 = vmatprep.subr.bf16.mxu0 %v674
    %860 = vmatpush1.bf16.msra.mxu0 %v673
    %861 = vmatprep.subr.bf16.mxu0 %v677
    %862 = vmatpush1.bf16.msra.mxu0 %v676
    %863 = vmatprep.subr.bf16.mxu0 %v680
    %864 = vmatpush1.bf16.msra.mxu0 %v679
    %865 = vmatprep.subr.bf16.mxu0 %v683
    %866 = vmatpush1.bf16.msra.mxu0 %v682
    %867 = vmatprep.subr.bf16.mxu0 %v686
    %868 = vmatpush1.bf16.msra.mxu0 %v685
    %869 = vmatprep.subr.bf16.mxu0 %v689
    %870 = vmatpush1.bf16.msra.mxu0 %v688
    %871 = vmatprep.subr.bf16.mxu0 %v692
    %872 = vmatpush1.bf16.msra.mxu0 %v691
    %873 = vmatprep.subr.bf16.mxu0 %v695
    %874 = vmatpush1.bf16.msra.mxu0 %v694
    %875 = vmatprep.subr.bf16.mxu0 %v698
    %876 = vmatpush1.bf16.msra.mxu0 %v697
    %877 = vmatprep.subr.bf16.mxu0 %v701
    %878 = vmatpush1.bf16.msra.mxu0 %v700
    %879 = vmatprep.subr.bf16.mxu0 %v704
    %880 = vmatpush1.bf16.msra.mxu0 %v703
    %881 = vmatprep.subr.bf16.mxu0 %v707
    %882 = vmatpush1.bf16.msra.mxu0 %v706
    %883 = vmatprep.subr.bf16.mxu0 %v710
    %884 = vmatpush1.bf16.msra.mxu0 %v709
    %885 = vmatprep.subr.bf16.mxu0 %v713
    %886 = vmatpush1.bf16.msra.mxu0 %v712
    %887 = vmatprep.subr.bf16.mxu0 %v716
    %888 = vmatpush1.bf16.msra.mxu0 %v715
    %889 = vmatprep.mubr.bf16.mxu0 %v297
    %890 = vmatmul.mubr.bf16.gmra.mrb[0].mxu0 %v296
    %v891 = vpop.f32.mrb[0].mxu0
    %v892 = vadd.f32 %v849, %v891
    %v893 = vpop.f32.mrb[0].mxu0
    %v894 = vadd.f32 %v851, %v893
    %v895 = vpop.f32.mrb[0].mxu0
    %v896 = vadd.f32 %v853, %v895
    %v897 = vpop.f32.mrb[0].mxu0
    %v898 = vadd.f32 %v855, %v897
    %899 = vdwg.mxu0
    %900 = vmatprep.subr.bf16.mxu0 0
    %901 = vmatpush1.bf16.msra.mxu0 %v624
    %902 = vmatprep.subr.bf16.mxu0 0
    %903 = vmatpush1.bf16.msra.mxu0 %v627
    %904 = vmatprep.subr.bf16.mxu0 0
    %905 = vmatpush1.bf16.msra.mxu0 %v630
    %906 = vmatprep.subr.bf16.mxu0 0
    %907 = vmatpush1.bf16.msra.mxu0 %v633
    %908 = vmatprep.subr.bf16.mxu0 0
    %909 = vmatpush1.bf16.msra.mxu0 %v636
    %910 = vmatprep.subr.bf16.mxu0 0
    %911 = vmatpush1.bf16.msra.mxu0 %v639
    %912 = vmatprep.subr.bf16.mxu0 0
    %913 = vmatpush1.bf16.msra.mxu0 %v642
    %914 = vmatprep.subr.bf16.mxu0 0
    %915 = vmatpush1.bf16.msra.mxu0 %v645
    %916 = vmatprep.subr.bf16.mxu0 0
    %917 = vmatpush1.bf16.msra.mxu0 %v648
    %918 = vmatprep.subr.bf16.mxu0 0
    %919 = vmatpush1.bf16.msra.mxu0 %v651
    %920 = vmatprep.subr.bf16.mxu0 0
    %921 = vmatpush1.bf16.msra.mxu0 %v654
    %922 = vmatprep.subr.bf16.mxu0 0
    %923 = vmatpush1.bf16.msra.mxu0 %v657
    %924 = vmatprep.subr.bf16.mxu0 0
    %925 = vmatpush1.bf16.msra.mxu0 %v660
    %926 = vmatprep.subr.bf16.mxu0 0
    %927 = vmatpush1.bf16.msra.mxu0 %v663
    %928 = vmatprep.subr.bf16.mxu0 0
    %929 = vmatpush1.bf16.msra.mxu0 %v666
    %930 = vmatprep.subr.bf16.mxu0 0
    %931 = vmatpush1.bf16.msra.mxu0 %v669
    %932 = vmatprep.mubr.bf16.mxu0 %v295
    %933 = vmatmul.mubr.bf16.gmra.mrb[0].mxu0 %v294
    %v934 = vpop.f32.mrb[0].mxu0
    %v935 = vadd.f32 %v278, %v934
    %v936 = vpop.f32.mrb[0].mxu0
    %v937 = vpop.f32.mrb[0].mxu0
    %v938 = vadd.f32 %v278, %v937
    %v939 = vpop.f32.mrb[0].mxu0
    %940 = vdwg.mxu0
    %941 = vmatprep.subr.bf16.mxu0 0
    %942 = vmatpush1.bf16.msra.mxu0 %v672
    %943 = vmatprep.subr.bf16.mxu0 0
    %944 = vmatpush1.bf16.msra.mxu0 %v675
    %945 = vmatprep.subr.bf16.mxu0 0
    %946 = vmatpush1.bf16.msra.mxu0 %v678
    %947 = vmatprep.subr.bf16.mxu0 0
    %948 = vmatpush1.bf16.msra.mxu0 %v681
    %949 = vmatprep.subr.bf16.mxu0 0
    %950 = vmatpush1.bf16.msra.mxu0 %v684
    %951 = vmatprep.subr.bf16.mxu0 0
    %952 = vmatpush1.bf16.msra.mxu0 %v687
    %953 = vmatprep.subr.bf16.mxu0 0
    %954 = vmatpush1.bf16.msra.mxu0 %v690
    %955 = vmatprep.subr.bf16.mxu0 0
    %956 = vmatpush1.bf16.msra.mxu0 %v693
    %957 = vmatprep.subr.bf16.mxu0 0
    %958 = vmatpush1.bf16.msra.mxu0 %v696
    %959 = vmatprep.subr.bf16.mxu0 0
    %960 = vmatpush1.bf16.msra.mxu0 %v699
    %961 = vmatprep.subr.bf16.mxu0 0
    %962 = vmatpush1.bf16.msra.mxu0 %v702
    %963 = vmatprep.subr.bf16.mxu0 0
    %964 = vmatpush1.bf16.msra.mxu0 %v705
    %965 = vmatprep.subr.bf16.mxu0 0
    %966 = vmatpush1.bf16.msra.mxu0 %v708
    %967 = vmatprep.subr.bf16.mxu0 0
    %968 = vmatpush1.bf16.msra.mxu0 %v711
    %969 = vmatprep.subr.bf16.mxu0 0
    %970 = vmatpush1.bf16.msra.mxu0 %v714
    %971 = vmatprep.subr.bf16.mxu0 0
    %972 = vmatpush1.bf16.msra.mxu0 %v717
    %973 = vmatprep.mubr.bf16.mxu0 %v297
    %974 = vmatmul.mubr.bf16.gmra.mrb[0].mxu0 %v296
    %v975 = vpop.f32.mrb[0].mxu0
    %v976 = vadd.f32 %v935, %v975
    %v977 = vpop.f32.mrb[0].mxu0
    %v978 = vpop.f32.mrb[0].mxu0
    %v979 = vadd.f32 %v938, %v978
    %v980 = vpop.f32.mrb[0].mxu0
    %981 = vdwg.mxu0
    %v982 = vmax.f32 %v892, 0.0
    %v983 = vmax.f32 %v894, 0.0
    %v984 = vmax.f32 %v976, 0.0
    %v985 = vmax.f32 %v896, 0.0
    %v986 = vmax.f32 %v898, 0.0
    %v987 = vmax.f32 %v979, 0.0
    %v988 = vpack.c.bf16 %v985, %v982
    %v989 = vpack.c.bf16 %v986, %v983
    %v990 = vpack.c.bf16 %v987, %v984
    %v991 = vld [vmem:[#allocation4] sm:$0xff]
    %v992 = vld [vmem:[#allocation4 + $0x8] sm:$0xff]
    %v993 = vld [vmem:[#allocation4 + $0x10] sm:$0xff]
    %v994 = vld [vmem:[#allocation4 + $0x18] sm:$0xff]
    %v995 = vld [vmem:[#allocation4 + $0x20] sm:$0xff]
    %v996 = vld [vmem:[#allocation4 + $0x28] sm:$0xff]
    %v997 = vld [vmem:[#allocation4 + $0x30] sm:$0xff]
    %v998 = vld [vmem:[#allocation4 + $0x38] sm:$0xff]
    %v999 = vld [vmem:[#allocation4 + $0x40] sm:$0xff]
    %v1000 = vld [vmem:[#allocation4 + $0x48] sm:$0xff]
    %v1001 = vld [vmem:[#allocation4 + $0x50] sm:$0xff]
    %v1002 = vld [vmem:[#allocation4 + $0x58] sm:$0xff]
    %v1003 = vld [vmem:[#allocation4 + $0x60] sm:$0xff]
    %v1004 = vld [vmem:[#allocation4 + $0x68] sm:$0xff]
    %v1005 = vld [vmem:[#allocation4 + $0x70] sm:$0xff]
    %v1006 = vld [vmem:[#allocation4 + $0x78] sm:$0xff]
    %v1007 = vld [vmem:[#allocation4 + $0x80] sm:$0xff]
    %v1008 = vld [vmem:[#allocation4 + $0x88] sm:$0xff]
    %v1009 = vld [vmem:[#allocation4 + $0x90] sm:$0xff]
    %v1010 = vld [vmem:[#allocation4 + $0x98] sm:$0xff]
    %v1011 = vld [vmem:[#allocation4 + $0xa0] sm:$0xff]
    %v1012 = vld [vmem:[#allocation4 + $0xa8] sm:$0xff]
    %v1013 = vld [vmem:[#allocation4 + $0xb0] sm:$0xff]
    %v1014 = vld [vmem:[#allocation4 + $0xb8] sm:$0xff]
    %v1015 = vld [vmem:[#allocation4 + $0xc0] sm:$0xff]
    %v1016 = vld [vmem:[#allocation4 + $0xc8] sm:$0xff]
    %v1017 = vld [vmem:[#allocation4 + $0xd0] sm:$0xff]
    %v1018 = vld [vmem:[#allocation4 + $0xd8] sm:$0xff]
    %v1019 = vld [vmem:[#allocation4 + $0xe0] sm:$0xff]
    %v1020 = vld [vmem:[#allocation4 + $0xe8] sm:$0xff]
    %v1021 = vld [vmem:[#allocation4 + $0xf0] sm:$0xff]
    %v1022 = vld [vmem:[#allocation4 + $0xf8] sm:$0xff]
    %v1023 = vld [vmem:[#allocation4 + $0x100] sm:$0xff]
    %v1024 = vld [vmem:[#allocation4 + $0x108] sm:$0xff]
    %v1025 = vld [vmem:[#allocation4 + $0x110] sm:$0xff]
    %v1026 = vld [vmem:[#allocation4 + $0x118] sm:$0xff]
    %v1027 = vld [vmem:[#allocation4 + $0x120] sm:$0xff]
    %v1028 = vld [vmem:[#allocation4 + $0x128] sm:$0xff]
    %v1029 = vld [vmem:[#allocation4 + $0x130] sm:$0xff]
    %v1030 = vld [vmem:[#allocation4 + $0x138] sm:$0xff]
    %v1031 = vld [vmem:[#allocation4 + $0x140] sm:$0xff]
    %v1032 = vld [vmem:[#allocation4 + $0x148] sm:$0xff]
    %v1033 = vld [vmem:[#allocation4 + $0x150] sm:$0xff]
    %v1034 = vld [vmem:[#allocation4 + $0x158] sm:$0xff]
    %v1035 = vld [vmem:[#allocation4 + $0x160] sm:$0xff]
    %v1036 = vld [vmem:[#allocation4 + $0x168] sm:$0xff]
    %v1037 = vld [vmem:[#allocation4 + $0x170] sm:$0xff]
    %v1038 = vld [vmem:[#allocation4 + $0x178] sm:$0xff]
    %v1039 = vld [vmem:[%s4] sm:$0x3]
    %v1041 = vlaneseq
    %v1042 = vshrl.u32 %v1041, 7
    %v1043 = vsub.s32 0, %v1042
    %v1044 = vrot.slane %v1039, %v1043
    %v1045 = vlaneseq
    %v1046 = vshrl.u32 %v1045, 7
    %v1047 = vsub.s32 1, %v1046
    %v1048 = vrot.slane %v1039, %v1047
    %v1099 = vunpack.c.l.b16 %v991
    %v1100 = vunpack.c.h.b16 %v991
    %v1101 = vunpack.c.l.b16 %v992
    %v1102 = vunpack.c.h.b16 %v992
    %v1103 = vunpack.c.l.b16 %v993
    %v1104 = vunpack.c.h.b16 %v993
    %v1105 = vunpack.c.l.b16 %v994
    %v1106 = vunpack.c.h.b16 %v994
    %v1107 = vunpack.c.l.b16 %v995
    %v1108 = vunpack.c.h.b16 %v995
    %v1109 = vunpack.c.l.b16 %v996
    %v1110 = vunpack.c.h.b16 %v996
    %v1111 = vunpack.c.l.b16 %v997
    %v1112 = vunpack.c.h.b16 %v997
    %v1113 = vunpack.c.l.b16 %v998
    %v1114 = vunpack.c.h.b16 %v998
    %v1115 = vunpack.c.l.b16 %v999
    %v1116 = vunpack.c.h.b16 %v999
    %v1117 = vunpack.c.l.b16 %v1000
    %v1118 = vunpack.c.h.b16 %v1000
    %v1119 = vunpack.c.l.b16 %v1001
    %v1120 = vunpack.c.h.b16 %v1001
    %v1121 = vunpack.c.l.b16 %v1002
    %v1122 = vunpack.c.h.b16 %v1002
    %v1123 = vunpack.c.l.b16 %v1003
    %v1124 = vunpack.c.h.b16 %v1003
    %v1125 = vunpack.c.l.b16 %v1004
    %v1126 = vunpack.c.h.b16 %v1004
    %v1127 = vunpack.c.l.b16 %v1005
    %v1128 = vunpack.c.h.b16 %v1005
    %v1129 = vunpack.c.l.b16 %v1006
    %v1130 = vunpack.c.h.b16 %v1006
    %v1131 = vunpack.c.l.b16 %v1007
    %v1132 = vunpack.c.h.b16 %v1007
    %v1133 = vunpack.c.l.b16 %v1008
    %v1134 = vunpack.c.h.b16 %v1008
    %v1135 = vunpack.c.l.b16 %v1009
    %v1136 = vunpack.c.h.b16 %v1009
    %v1137 = vunpack.c.l.b16 %v1010
    %v1138 = vunpack.c.h.b16 %v1010
    %v1139 = vunpack.c.l.b16 %v1011
    %v1140 = vunpack.c.h.b16 %v1011
    %v1141 = vunpack.c.l.b16 %v1012
    %v1142 = vunpack.c.h.b16 %v1012
    %v1143 = vunpack.c.l.b16 %v1013
    %v1144 = vunpack.c.h.b16 %v1013
    %v1145 = vunpack.c.l.b16 %v1014
    %v1146 = vunpack.c.h.b16 %v1014
    %v1147 = vunpack.c.l.b16 %v1015
    %v1148 = vunpack.c.h.b16 %v1015
    %v1149 = vunpack.c.l.b16 %v1016
    %v1150 = vunpack.c.h.b16 %v1016
    %v1151 = vunpack.c.l.b16 %v1017
    %v1152 = vunpack.c.h.b16 %v1017
    %v1153 = vunpack.c.l.b16 %v1018
    %v1154 = vunpack.c.h.b16 %v1018
    %v1155 = vunpack.c.l.b16 %v1019
    %v1156 = vunpack.c.h.b16 %v1019
    %v1157 = vunpack.c.l.b16 %v1020
    %v1158 = vunpack.c.h.b16 %v1020
    %v1159 = vunpack.c.l.b16 %v1021
    %v1160 = vunpack.c.h.b16 %v1021
    %v1161 = vunpack.c.l.b16 %v1022
    %v1162 = vunpack.c.h.b16 %v1022
    %v1163 = vunpack.c.l.b16 %v1023
    %v1164 = vunpack.c.h.b16 %v1023
    %v1165 = vunpack.c.l.b16 %v1024
    %v1166 = vunpack.c.h.b16 %v1024
    %v1167 = vunpack.c.l.b16 %v1025
    %v1168 = vunpack.c.h.b16 %v1025
    %v1169 = vunpack.c.l.b16 %v1026
    %v1170 = vunpack.c.h.b16 %v1026
    %v1171 = vunpack.c.l.b16 %v1027
    %v1172 = vunpack.c.h.b16 %v1027
    %v1173 = vunpack.c.l.b16 %v1028
    %v1174 = vunpack.c.h.b16 %v1028
    %v1175 = vunpack.c.l.b16 %v1029
    %v1176 = vunpack.c.h.b16 %v1029
    %v1177 = vunpack.c.l.b16 %v1030
    %v1178 = vunpack.c.h.b16 %v1030
    %v1179 = vunpack.c.l.b16 %v1031
    %v1180 = vunpack.c.h.b16 %v1031
    %v1181 = vunpack.c.l.b16 %v1032
    %v1182 = vunpack.c.h.b16 %v1032
    %v1183 = vunpack.c.l.b16 %v1033
    %v1184 = vunpack.c.h.b16 %v1033
    %v1185 = vunpack.c.l.b16 %v1034
    %v1186 = vunpack.c.h.b16 %v1034
    %v1187 = vunpack.c.l.b16 %v1035
    %v1188 = vunpack.c.h.b16 %v1035
    %v1189 = vunpack.c.l.b16 %v1036
    %v1190 = vunpack.c.h.b16 %v1036
    %v1191 = vunpack.c.l.b16 %v1037
    %v1192 = vunpack.c.h.b16 %v1037
    %v1193 = vunpack.c.l.b16 %v1038
    %v1194 = vunpack.c.h.b16 %v1038
    %v1195 = vpack.c.b16 %v1101, %v1099
    %v1196 = vpack.c.b16 %v1102, %v1100
    %v1197 = vpack.c.b16 %v1105, %v1103
    %v1198 = vpack.c.b16 %v1106, %v1104
    %v1199 = vpack.c.b16 %v1109, %v1107
    %v1200 = vpack.c.b16 %v1110, %v1108
    %v1201 = vpack.c.b16 %v1113, %v1111
    %v1202 = vpack.c.b16 %v1114, %v1112
    %v1203 = vpack.c.b16 %v1117, %v1115
    %v1204 = vpack.c.b16 %v1118, %v1116
    %v1205 = vpack.c.b16 %v1121, %v1119
    %v1206 = vpack.c.b16 %v1122, %v1120
    %v1207 = vpack.c.b16 %v1125, %v1123
    %v1208 = vpack.c.b16 %v1126, %v1124
    %v1209 = vpack.c.b16 %v1129, %v1127
    %v1210 = vpack.c.b16 %v1130, %v1128
    %v1211 = vpack.c.b16 %v1133, %v1131
    %v1212 = vpack.c.b16 %v1134, %v1132
    %v1213 = vpack.c.b16 %v1137, %v1135
    %v1214 = vpack.c.b16 %v1138, %v1136
    %v1215 = vpack.c.b16 %v1141, %v1139
    %v1216 = vpack.c.b16 %v1142, %v1140
    %v1217 = vpack.c.b16 %v1145, %v1143
    %v1218 = vpack.c.b16 %v1146, %v1144
    %v1219 = vpack.c.b16 %v1149, %v1147
    %v1220 = vpack.c.b16 %v1150, %v1148
    %v1221 = vpack.c.b16 %v1153, %v1151
    %v1222 = vpack.c.b16 %v1154, %v1152
    %v1223 = vpack.c.b16 %v1157, %v1155
    %v1224 = vpack.c.b16 %v1158, %v1156
    %v1225 = vpack.c.b16 %v1161, %v1159
    %v1226 = vpack.c.b16 %v1162, %v1160
    %v1227 = vpack.c.b16 %v1165, %v1163
    %v1228 = vpack.c.b16 %v1166, %v1164
    %v1229 = vpack.c.b16 %v1169, %v1167
    %v1230 = vpack.c.b16 %v1170, %v1168
    %v1231 = vpack.c.b16 %v1173, %v1171
    %v1232 = vpack.c.b16 %v1174, %v1172
    %v1233 = vpack.c.b16 %v1177, %v1175
    %v1234 = vpack.c.b16 %v1178, %v1176
    %v1235 = vpack.c.b16 %v1181, %v1179
    %v1236 = vpack.c.b16 %v1182, %v1180
    %v1237 = vpack.c.b16 %v1185, %v1183
    %v1238 = vpack.c.b16 %v1186, %v1184
    %v1239 = vpack.c.b16 %v1189, %v1187
    %v1240 = vpack.c.b16 %v1190, %v1188
    %v1241 = vpack.c.b16 %v1193, %v1191
    %v1242 = vpack.c.b16 %v1194, %v1192
    %1291 = vmatprep.subr.bf16.mxu0 %v1196
    %1292 = vmatpush1.bf16.msra.mxu0 %v1195
    %1293 = vmatprep.subr.bf16.mxu0 %v1198
    %1294 = vmatpush1.bf16.msra.mxu0 %v1197
    %1295 = vmatprep.subr.bf16.mxu0 %v1200
    %1296 = vmatpush1.bf16.msra.mxu0 %v1199
    %1297 = vmatprep.subr.bf16.mxu0 %v1202
    %1298 = vmatpush1.bf16.msra.mxu0 %v1201
    %1299 = vmatprep.subr.bf16.mxu0 %v1204
    %1300 = vmatpush1.bf16.msra.mxu0 %v1203
    %1301 = vmatprep.subr.bf16.mxu0 %v1206
    %1302 = vmatpush1.bf16.msra.mxu0 %v1205
    %1303 = vmatprep.subr.bf16.mxu0 %v1208
    %1304 = vmatpush1.bf16.msra.mxu0 %v1207
    %1305 = vmatprep.subr.bf16.mxu0 %v1210
    %1306 = vmatpush1.bf16.msra.mxu0 %v1209
    %1307 = vmatprep.subr.bf16.mxu0 %v1212
    %1308 = vmatpush1.bf16.msra.mxu0 %v1211
    %1309 = vmatprep.subr.bf16.mxu0 %v1214
    %1310 = vmatpush1.bf16.msra.mxu0 %v1213
    %1311 = vmatprep.subr.bf16.mxu0 %v1216
    %1312 = vmatpush1.bf16.msra.mxu0 %v1215
    %1313 = vmatprep.subr.bf16.mxu0 %v1218
    %1314 = vmatpush1.bf16.msra.mxu0 %v1217
    %1315 = vmatprep.subr.bf16.mxu0 %v1220
    %1316 = vmatpush1.bf16.msra.mxu0 %v1219
    %1317 = vmatprep.subr.bf16.mxu0 %v1222
    %1318 = vmatpush1.bf16.msra.mxu0 %v1221
    %1319 = vmatprep.subr.bf16.mxu0 %v1224
    %1320 = vmatpush1.bf16.msra.mxu0 %v1223
    %1321 = vmatprep.subr.bf16.mxu0 %v1226
    %1322 = vmatpush1.bf16.msra.mxu0 %v1225
    %1323 = vmatprep.mubr.bf16.mxu0 %v989
    %1324 = vmatmul.mubr.bf16.gmra.mrb[0].mxu0 %v988
    %v1325 = vpop.f32.mrb[0].mxu0
    %v1326 = vadd.f32 %v1044, %v1325
    %v1327 = vpop.f32.mrb[0].mxu0
    %v1328 = vadd.f32 %v1048, %v1327
    %v1329 = vpop.f32.mrb[0].mxu0
    %v1330 = vadd.f32 %v1044, %v1329
    %v1331 = vpop.f32.mrb[0].mxu0
    %v1332 = vadd.f32 %v1048, %v1331
    %1333 = vdwg.mxu0
    %1334 = vmatprep.subr.bf16.mxu0 %v1228
    %1335 = vmatpush1.bf16.msra.mxu0 %v1227
    %1336 = vmatprep.subr.bf16.mxu0 %v1230
    %1337 = vmatpush1.bf16.msra.mxu0 %v1229
    %1338 = vmatprep.subr.bf16.mxu0 %v1232
    %1339 = vmatpush1.bf16.msra.mxu0 %v1231
    %1340 = vmatprep.subr.bf16.mxu0 %v1234
    %1341 = vmatpush1.bf16.msra.mxu0 %v1233
    %1342 = vmatprep.subr.bf16.mxu0 %v1236
    %1343 = vmatpush1.bf16.msra.mxu0 %v1235
    %1344 = vmatprep.subr.bf16.mxu0 %v1238
    %1345 = vmatpush1.bf16.msra.mxu0 %v1237
    %1346 = vmatprep.subr.bf16.mxu0 %v1240
    %1347 = vmatpush1.bf16.msra.mxu0 %v1239
    %1348 = vmatprep.subr.bf16.mxu0 %v1242
    %1349 = vmatpush1.bf16.msra.mxu0 %v1241
    %1350 = vmatprep.subr.bf16.mxu0 0
    %1351 = vmatpush1.bf16.msra.mxu0 0
    %1352 = vmatprep.subr.bf16.mxu0 0
    %1353 = vmatpush1.bf16.msra.mxu0 0
    %1354 = vmatprep.subr.bf16.mxu0 0
    %1355 = vmatpush1.bf16.msra.mxu0 0
    %1356 = vmatprep.subr.bf16.mxu0 0
    %1357 = vmatpush1.bf16.msra.mxu0 0
    %1358 = vmatprep.subr.bf16.mxu0 0
    %1359 = vmatpush1.bf16.msra.mxu0 0
    %1360 = vmatprep.subr.bf16.mxu0 0
    %1361 = vmatpush1.bf16.msra.mxu0 0
    %1362 = vmatprep.subr.bf16.mxu0 0
    %1363 = vmatpush1.bf16.msra.mxu0 0
    %1364 = vmatprep.subr.bf16.mxu0 0
    %1365 = vmatpush1.bf16.msra.mxu0 0
    %1366 = vmatprep.mubr.bf16.mxu0 0
    %1367 = vmatmul.mubr.bf16.gmra.mrb[0].mxu0 %v990
    %v1368 = vpop.f32.mrb[0].mxu0
    %v1369 = vadd.f32 %v1326, %v1368
    %v1370 = vpop.f32.mrb[0].mxu0
    %v1371 = vadd.f32 %v1328, %v1370
    %v1372 = vpop.f32.mrb[0].mxu0
    %v1373 = vadd.f32 %v1330, %v1372
    %v1374 = vpop.f32.mrb[0].mxu0
    %v1375 = vadd.f32 %v1332, %v1374
    %1376 = vdwg.mxu0
    %v1377 = vmax.f32 %v1369, 0.0
    %v1378 = vmax.f32 %v1371, 0.0
    %v1379 = vmax.f32 %v1373, 0.0
    %v1380 = vmax.f32 %v1375, 0.0
    %v1381 = vpack.c.bf16 %v1379, %v1377
    %v1382 = vpack.c.bf16 %v1380, %v1378
    %v1383 = vld [vmem:[%s5] sm:$0xf]
    %v1384 = vld [vmem:[%s5 + $0x4] sm:$0xf]
    %v1385 = vld [vmem:[%s5 + $0x8] sm:$0xf]
    %v1386 = vld [vmem:[%s5 + $0xc] sm:$0xf]
    %v1387 = vld [vmem:[%s5 + $0x10] sm:$0xf]
    %v1388 = vld [vmem:[%s5 + $0x14] sm:$0xf]
    %v1389 = vld [vmem:[%s5 + $0x18] sm:$0xf]
    %v1390 = vld [vmem:[%s5 + $0x1c] sm:$0xf]
    %v1391 = vld [vmem:[%s5 + $0x20] sm:$0xf]
    %v1392 = vld [vmem:[%s5 + $0x24] sm:$0xf]
    %v1393 = vld [vmem:[%s5 + $0x28] sm:$0xf]
    %v1394 = vld [vmem:[%s5 + $0x2c] sm:$0xf]
    %v1395 = vld [vmem:[%s5 + $0x30] sm:$0xf]
    %v1396 = vld [vmem:[%s5 + $0x34] sm:$0xf]
    %v1397 = vld [vmem:[%s5 + $0x38] sm:$0xf]
    %v1398 = vld [vmem:[%s5 + $0x3c] sm:$0xf]
    %v1399 = vld [vmem:[%s5 + $0x40] sm:$0xf]
    %v1400 = vld [vmem:[%s5 + $0x44] sm:$0xf]
    %v1401 = vld [vmem:[%s5 + $0x48] sm:$0xf]
    %v1402 = vld [vmem:[%s5 + $0x4c] sm:$0xf]
    %v1403 = vld [vmem:[%s5 + $0x50] sm:$0xf]
    %v1404 = vld [vmem:[%s5 + $0x54] sm:$0xf]
    %v1405 = vld [vmem:[%s5 + $0x58] sm:$0xf]
    %v1406 = vld [vmem:[%s5 + $0x5c] sm:$0xf]
    %v1407 = vld [vmem:[%s5 + $0x60] sm:$0xf]
    %v1408 = vld [vmem:[%s5 + $0x64] sm:$0xf]
    %v1409 = vld [vmem:[%s5 + $0x68] sm:$0xf]
    %v1410 = vld [vmem:[%s5 + $0x6c] sm:$0xf]
    %v1411 = vld [vmem:[%s5 + $0x70] sm:$0xf]
    %v1412 = vld [vmem:[%s5 + $0x74] sm:$0xf]
    %v1413 = vld [vmem:[%s5 + $0x78] sm:$0xf]
    %v1414 = vld [vmem:[%s5 + $0x7c] sm:$0xf]
    %v1415 = vld [vmem:[%s6] sm:$0x1]
    %v1417 = vlaneseq
    %v1418 = vshrl.u32 %v1417, 7
    %v1419 = vsub.s32 0, %v1418
    %v1420 = vrot.slane %v1415, %v1419
    %v1454 = vunpack.c.l.b16 %v1383
    %v1455 = vunpack.c.l.b16 %v1384
    %v1456 = vunpack.c.l.b16 %v1385
    %v1457 = vunpack.c.l.b16 %v1386
    %v1458 = vunpack.c.l.b16 %v1387
    %v1459 = vunpack.c.l.b16 %v1388
    %v1460 = vunpack.c.l.b16 %v1389
    %v1461 = vunpack.c.l.b16 %v1390
    %v1462 = vunpack.c.l.b16 %v1391
    %v1463 = vunpack.c.l.b16 %v1392
    %v1464 = vunpack.c.l.b16 %v1393
    %v1465 = vunpack.c.l.b16 %v1394
    %v1466 = vunpack.c.l.b16 %v1395
    %v1467 = vunpack.c.l.b16 %v1396
    %v1468 = vunpack.c.l.b16 %v1397
    %v1469 = vunpack.c.l.b16 %v1398
    %v1470 = vunpack.c.l.b16 %v1399
    %v1471 = vunpack.c.l.b16 %v1400
    %v1472 = vunpack.c.l.b16 %v1401
    %v1473 = vunpack.c.l.b16 %v1402
    %v1474 = vunpack.c.l.b16 %v1403
    %v1475 = vunpack.c.l.b16 %v1404
    %v1476 = vunpack.c.l.b16 %v1405
    %v1477 = vunpack.c.l.b16 %v1406
    %v1478 = vunpack.c.l.b16 %v1407
    %v1479 = vunpack.c.l.b16 %v1408
    %v1480 = vunpack.c.l.b16 %v1409
    %v1481 = vunpack.c.l.b16 %v1410
    %v1482 = vunpack.c.l.b16 %v1411
    %v1483 = vunpack.c.l.b16 %v1412
    %v1484 = vunpack.c.l.b16 %v1413
    %v1485 = vunpack.c.l.b16 %v1414
    %v1486 = vpack.c.b16 %v1455, %v1454
    %v1487 = vpack.c.b16 %v1457, %v1456
    %v1488 = vpack.c.b16 %v1459, %v1458
    %v1489 = vpack.c.b16 %v1461, %v1460
    %v1490 = vpack.c.b16 %v1463, %v1462
    %v1491 = vpack.c.b16 %v1465, %v1464
    %v1492 = vpack.c.b16 %v1467, %v1466
    %v1493 = vpack.c.b16 %v1469, %v1468
    %v1494 = vpack.c.b16 %v1471, %v1470
    %v1495 = vpack.c.b16 %v1473, %v1472
    %v1496 = vpack.c.b16 %v1475, %v1474
    %v1497 = vpack.c.b16 %v1477, %v1476
    %v1498 = vpack.c.b16 %v1479, %v1478
    %v1499 = vpack.c.b16 %v1481, %v1480
    %v1500 = vpack.c.b16 %v1483, %v1482
    %v1501 = vpack.c.b16 %v1485, %v1484
    %1518 = vmatprep.subr.bf16.mxu0 0
    %1519 = vmatpush1.bf16.msra.mxu0 %v1486
    %1520 = vmatprep.subr.bf16.mxu0 0
    %1521 = vmatpush1.bf16.msra.mxu0 %v1487
    %1522 = vmatprep.subr.bf16.mxu0 0
    %1523 = vmatpush1.bf16.msra.mxu0 %v1488
    %1524 = vmatprep.subr.bf16.mxu0 0
    %1525 = vmatpush1.bf16.msra.mxu0 %v1489
    %1526 = vmatprep.subr.bf16.mxu0 0
    %1527 = vmatpush1.bf16.msra.mxu0 %v1490
    %1528 = vmatprep.subr.bf16.mxu0 0
    %1529 = vmatpush1.bf16.msra.mxu0 %v1491
    %1530 = vmatprep.subr.bf16.mxu0 0
    %1531 = vmatpush1.bf16.msra.mxu0 %v1492
    %1532 = vmatprep.subr.bf16.mxu0 0
    %1533 = vmatpush1.bf16.msra.mxu0 %v1493
    %1534 = vmatprep.subr.bf16.mxu0 0
    %1535 = vmatpush1.bf16.msra.mxu0 %v1494
    %1536 = vmatprep.subr.bf16.mxu0 0
    %1537 = vmatpush1.bf16.msra.mxu0 %v1495
    %1538 = vmatprep.subr.bf16.mxu0 0
    %1539 = vmatpush1.bf16.msra.mxu0 %v1496
    %1540 = vmatprep.subr.bf16.mxu0 0
    %1541 = vmatpush1.bf16.msra.mxu0 %v1497
    %1542 = vmatprep.subr.bf16.mxu0 0
    %1543 = vmatpush1.bf16.msra.mxu0 %v1498
    %1544 = vmatprep.subr.bf16.mxu0 0
    %1545 = vmatpush1.bf16.msra.mxu0 %v1499
    %1546 = vmatprep.subr.bf16.mxu0 0
    %1547 = vmatpush1.bf16.msra.mxu0 %v1500
    %1548 = vmatprep.subr.bf16.mxu0 0
    %1549 = vmatpush1.bf16.msra.mxu0 %v1501
    %1550 = vmatprep.mubr.bf16.mxu0 %v1382
    %1551 = vmatmul.mubr.bf16.gmra.mrb[0].mxu0 %v1381
    %v1552 = vpop.f32.mrb[0].mxu0
    %v1553 = vadd.f32 %v1420, %v1552
    %v1554 = vpop.f32.mrb[0].mxu0
    %v1555 = vpop.f32.mrb[0].mxu0
    %v1556 = vadd.f32 %v1420, %v1555
    %v1557 = vpop.f32.mrb[0].mxu0
    %1558 = vdwg.mxu0
    %v1559 = vmax.f32 %v1553, 0.0
    %v1560 = vmax.f32 %v1556, 0.0
    %v1561 = vpack.c.bf16 %v1560, %v1559
    %v1562 = vld [vmem:[#allocation6] sm:$0xf]
    %v1563 = vld [vmem:[#allocation6 + $0x4] sm:$0xf]
    %v1564 = vld [vmem:[#allocation6 + $0x8] sm:$0xf]
    %v1565 = vld [vmem:[#allocation6 + $0xc] sm:$0xf]
    %v1566 = vld [vmem:[#allocation6 + $0x10] sm:$0xf]
    %v1567 = vld [vmem:[#allocation6 + $0x14] sm:$0xf]
    %v1568 = vld [vmem:[#allocation6 + $0x18] sm:$0xf]
    %v1569 = vld [vmem:[#allocation6 + $0x1c] sm:$0xf]
    %v1570 = vld [vmem:[#allocation6 + $0x20] sm:$0xf]
    %v1571 = vld [vmem:[#allocation6 + $0x24] sm:$0xf]
    %v1572 = vld [vmem:[#allocation6 + $0x28] sm:$0xf]
    %v1573 = vld [vmem:[#allocation6 + $0x2c] sm:$0xf]
    %v1574 = vld [vmem:[#allocation6 + $0x30] sm:$0xf]
    %v1575 = vld [vmem:[#allocation6 + $0x34] sm:$0xf]
    %v1576 = vld [vmem:[#allocation6 + $0x38] sm:$0xf]
    %v1577 = vld [vmem:[#allocation6 + $0x3c] sm:$0xf]
    %v1578 = vld [vmem:[%s8] sm:$0x1]
    %v1580 = vlaneseq
    %v1581 = vshrl.u32 %v1580, 7
    %v1582 = vsub.s32 0, %v1581
    %v1583 = vrot.slane %v1578, %v1582
    %v1601 = vunpack.c.l.b16 %v1562
    %v1602 = vunpack.c.l.b16 %v1563
    %v1603 = vunpack.c.l.b16 %v1564
    %v1604 = vunpack.c.l.b16 %v1565
    %v1605 = vunpack.c.l.b16 %v1566
    %v1606 = vunpack.c.l.b16 %v1567
    %v1607 = vunpack.c.l.b16 %v1568
    %v1608 = vunpack.c.l.b16 %v1569
    %v1609 = vunpack.c.l.b16 %v1570
    %v1610 = vunpack.c.l.b16 %v1571
    %v1611 = vunpack.c.l.b16 %v1572
    %v1612 = vunpack.c.l.b16 %v1573
    %v1613 = vunpack.c.l.b16 %v1574
    %v1614 = vunpack.c.l.b16 %v1575
    %v1615 = vunpack.c.l.b16 %v1576
    %v1616 = vunpack.c.l.b16 %v1577
    %v1617 = vpack.c.b16 %v1602, %v1601
    %v1618 = vpack.c.b16 %v1604, %v1603
    %v1619 = vpack.c.b16 %v1606, %v1605
    %v1620 = vpack.c.b16 %v1608, %v1607
    %v1621 = vpack.c.b16 %v1610, %v1609
    %v1622 = vpack.c.b16 %v1612, %v1611
    %v1623 = vpack.c.b16 %v1614, %v1613
    %v1624 = vpack.c.b16 %v1616, %v1615
    %1633 = vmatprep.subr.bf16.mxu0 0
    %1634 = vmatpush1.bf16.msra.mxu0 %v1617
    %1635 = vmatprep.subr.bf16.mxu0 0
    %1636 = vmatpush1.bf16.msra.mxu0 %v1618
    %1637 = vmatprep.subr.bf16.mxu0 0
    %1638 = vmatpush1.bf16.msra.mxu0 %v1619
    %1639 = vmatprep.subr.bf16.mxu0 0
    %1640 = vmatpush1.bf16.msra.mxu0 %v1620
    %1641 = vmatprep.subr.bf16.mxu0 0
    %1642 = vmatpush1.bf16.msra.mxu0 %v1621
    %1643 = vmatprep.subr.bf16.mxu0 0
    %1644 = vmatpush1.bf16.msra.mxu0 %v1622
    %1645 = vmatprep.subr.bf16.mxu0 0
    %1646 = vmatpush1.bf16.msra.mxu0 %v1623
    %1647 = vmatprep.subr.bf16.mxu0 0
    %1648 = vmatpush1.bf16.msra.mxu0 %v1624
    %1649 = vmatprep.subr.bf16.mxu0 0
    %1650 = vmatpush1.bf16.msra.mxu0 0
    %1651 = vmatprep.subr.bf16.mxu0 0
    %1652 = vmatpush1.bf16.msra.mxu0 0
    %1653 = vmatprep.subr.bf16.mxu0 0
    %1654 = vmatpush1.bf16.msra.mxu0 0
    %1655 = vmatprep.subr.bf16.mxu0 0
    %1656 = vmatpush1.bf16.msra.mxu0 0
    %1657 = vmatprep.subr.bf16.mxu0 0
    %1658 = vmatpush1.bf16.msra.mxu0 0
    %1659 = vmatprep.subr.bf16.mxu0 0
    %1660 = vmatpush1.bf16.msra.mxu0 0
    %1661 = vmatprep.subr.bf16.mxu0 0
    %1662 = vmatpush1.bf16.msra.mxu0 0
    %1663 = vmatprep.subr.bf16.mxu0 0
    %1664 = vmatpush1.bf16.msra.mxu0 0
    %1665 = vmatprep.mubr.bf16.mxu0 0
    %1666 = vmatmul.mubr.bf16.gmra.mrb[0].mxu0 %v1561
    %v1667 = vpop.f32.mrb[0].mxu0
    %v1668 = vadd.f32 %v1583, %v1667
    %v1669 = vpop.f32.mrb[0].mxu0
    %v1670 = vpop.f32.mrb[0].mxu0
    %v1671 = vadd.f32 %v1583, %v1670
    %v1672 = vpop.f32.mrb[0].mxu0
    %1673 = vdwg.mxu0
    %v1674 = vmax.f32 %v1668, 0.0
    %v1675 = vmax.f32 %v1671, 0.0
    %v1676 = vmin.f32 %v1674, 6.0
    %v1677 = vmin.f32 %v1675, 6.0
    %v1678 = vpack.c.bf16 %v1677, %v1676
    %v1679 = vld [vmem:[#allocation7] sm:$0xf]
    %v1680 = vld [vmem:[#allocation7 + $0x4] sm:$0xf]
    %v1681 = vld [vmem:[#allocation7 + $0x8] sm:$0xf]
    %v1682 = vld [vmem:[#allocation7 + $0xc] sm:$0xf]
    %v1683 = vld [vmem:[#allocation7 + $0x10] sm:$0xf]
    %v1684 = vld [vmem:[#allocation7 + $0x14] sm:$0xf]
    %v1685 = vld [vmem:[#allocation7 + $0x18] sm:$0xf]
    %v1686 = vld [vmem:[#allocation7 + $0x1c] sm:$0xf]
    %v1687 = vld [vmem:[#allocation7 + $0x20] sm:$0xf]
    %v1688 = vld [vmem:[#allocation7 + $0x24] sm:$0xf]
    %v1689 = vld [vmem:[#allocation7 + $0x28] sm:$0xf]
    %v1690 = vld [vmem:[#allocation7 + $0x2c] sm:$0xf]
    %v1691 = vld [vmem:[#allocation7 + $0x30] sm:$0xf]
    %v1692 = vld [vmem:[#allocation7 + $0x34] sm:$0xf]
    %v1693 = vld [vmem:[#allocation7 + $0x38] sm:$0xf]
    %v1694 = vld [vmem:[#allocation7 + $0x3c] sm:$0xf]
    %v1695 = vld [vmem:[%s10] sm:$0x1]
    %v1697 = vlaneseq
    %v1698 = vshrl.u32 %v1697, 7
    %v1699 = vsub.s32 0, %v1698
    %v1700 = vrot.slane %v1695, %v1699
    %v1718 = vunpack.c.l.b16 %v1679
    %v1719 = vunpack.c.l.b16 %v1680
    %v1720 = vunpack.c.l.b16 %v1681
    %v1721 = vunpack.c.l.b16 %v1682
    %v1722 = vunpack.c.l.b16 %v1683
    %v1723 = vunpack.c.l.b16 %v1684
    %v1724 = vunpack.c.l.b16 %v1685
    %v1725 = vunpack.c.l.b16 %v1686
    %v1726 = vunpack.c.l.b16 %v1687
    %v1727 = vunpack.c.l.b16 %v1688
    %v1728 = vunpack.c.l.b16 %v1689
    %v1729 = vunpack.c.l.b16 %v1690
    %v1730 = vunpack.c.l.b16 %v1691
    %v1731 = vunpack.c.l.b16 %v1692
    %v1732 = vunpack.c.l.b16 %v1693
    %v1733 = vunpack.c.l.b16 %v1694
    %v1734 = vpack.c.b16 %v1719, %v1718
    %v1735 = vpack.c.b16 %v1721, %v1720
    %v1736 = vpack.c.b16 %v1723, %v1722
    %v1737 = vpack.c.b16 %v1725, %v1724
    %v1738 = vpack.c.b16 %v1727, %v1726
    %v1739 = vpack.c.b16 %v1729, %v1728
    %v1740 = vpack.c.b16 %v1731, %v1730
    %v1741 = vpack.c.b16 %v1733, %v1732
    %1750 = vmatprep.subr.bf16.mxu0 0
    %1751 = vmatpush1.bf16.msra.mxu0 %v1734
    %1752 = vmatprep.subr.bf16.mxu0 0
    %1753 = vmatpush1.bf16.msra.mxu0 %v1735
    %1754 = vmatprep.subr.bf16.mxu0 0
    %1755 = vmatpush1.bf16.msra.mxu0 %v1736
    %1756 = vmatprep.subr.bf16.mxu0 0
    %1757 = vmatpush1.bf16.msra.mxu0 %v1737
    %1758 = vmatprep.subr.bf16.mxu0 0
    %1759 = vmatpush1.bf16.msra.mxu0 %v1738
    %1760 = vmatprep.subr.bf16.mxu0 0
    %1761 = vmatpush1.bf16.msra.mxu0 %v1739
    %1762 = vmatprep.subr.bf16.mxu0 0
    %1763 = vmatpush1.bf16.msra.mxu0 %v1740
    %1764 = vmatprep.subr.bf16.mxu0 0
    %1765 = vmatpush1.bf16.msra.mxu0 %v1741
    %1766 = vmatprep.subr.bf16.mxu0 0
    %1767 = vmatpush1.bf16.msra.mxu0 0
    %1768 = vmatprep.subr.bf16.mxu0 0
    %1769 = vmatpush1.bf16.msra.mxu0 0
    %1770 = vmatprep.subr.bf16.mxu0 0
    %1771 = vmatpush1.bf16.msra.mxu0 0
    %1772 = vmatprep.subr.bf16.mxu0 0
    %1773 = vmatpush1.bf16.msra.mxu0 0
    %1774 = vmatprep.subr.bf16.mxu0 0
    %1775 = vmatpush1.bf16.msra.mxu0 0
    %1776 = vmatprep.subr.bf16.mxu0 0
    %1777 = vmatpush1.bf16.msra.mxu0 0
    %1778 = vmatprep.subr.bf16.mxu0 0
    %1779 = vmatpush1.bf16.msra.mxu0 0
    %1780 = vmatprep.subr.bf16.mxu0 0
    %1781 = vmatpush1.bf16.msra.mxu0 0
    %1782 = vmatprep.mubr.bf16.mxu0 0
    %1783 = vmatmul.mubr.bf16.gmra.mrb[0].mxu0 %v1678
    %v1784 = vpop.f32.mrb[0].mxu0
    %v1785 = vadd.f32 %v1700, %v1784
    %v1786 = vpop.f32.mrb[0].mxu0
    %v1787 = vpop.f32.mrb[0].mxu0
    %v1788 = vadd.f32 %v1700, %v1787
    %v1789 = vpop.f32.mrb[0].mxu0
    %1790 = vdwg.mxu0
    %v1791 = vmax.f32 %v1785, 0.0
    %v1792 = vmax.f32 %v1788, 0.0
    %v1793 = vmin.f32 %v1791, 6.0
    %v1794 = vmin.f32 %v1792, 6.0
    %v1795 = vpack.c.bf16 %v1794, %v1793
    %v1796 = vld [vmem:[#allocation9] sm:$0xf]
    %v1797 = vld [vmem:[#allocation9 + $0x4] sm:$0xf]
    %v1798 = vld [vmem:[#allocation9 + $0x8] sm:$0xf]
    %v1799 = vld [vmem:[#allocation9 + $0xc] sm:$0xf]
    %v1800 = vld [vmem:[#allocation9 + $0x10] sm:$0xf]
    %v1801 = vld [vmem:[#allocation9 + $0x14] sm:$0xf]
    %v1802 = vld [vmem:[#allocation9 + $0x18] sm:$0xf]
    %v1803 = vld [vmem:[#allocation9 + $0x1c] sm:$0xf]
    %v1804 = vld [vmem:[#allocation9 + $0x20] sm:$0xf]
    %v1805 = vld [vmem:[#allocation9 + $0x24] sm:$0xf]
    %v1806 = vld [vmem:[#allocation9 + $0x28] sm:$0xf]
    %v1807 = vld [vmem:[#allocation9 + $0x2c] sm:$0xf]
    %v1808 = vld [vmem:[#allocation9 + $0x30] sm:$0xf]
    %v1809 = vld [vmem:[#allocation9 + $0x34] sm:$0xf]
    %v1810 = vld [vmem:[#allocation9 + $0x38] sm:$0xf]
    %v1811 = vld [vmem:[#allocation9 + $0x3c] sm:$0xf]
    %v1812 = vld [vmem:[%s12] sm:$0x1]
    %v1814 = vlaneseq
    %v1815 = vshrl.u32 %v1814, 7
    %v1816 = vsub.s32 0, %v1815
    %v1817 = vrot.slane %v1812, %v1816
    %v1835 = vunpack.c.l.b16 %v1796
    %v1836 = vunpack.c.l.b16 %v1797
    %v1837 = vunpack.c.l.b16 %v1798
    %v1838 = vunpack.c.l.b16 %v1799
    %v1839 = vunpack.c.l.b16 %v1800
    %v1840 = vunpack.c.l.b16 %v1801
    %v1841 = vunpack.c.l.b16 %v1802
    %v1842 = vunpack.c.l.b16 %v1803
    %v1843 = vunpack.c.l.b16 %v1804
    %v1844 = vunpack.c.l.b16 %v1805
    %v1845 = vunpack.c.l.b16 %v1806
    %v1846 = vunpack.c.l.b16 %v1807
    %v1847 = vunpack.c.l.b16 %v1808
    %v1848 = vunpack.c.l.b16 %v1809
    %v1849 = vunpack.c.l.b16 %v1810
    %v1850 = vunpack.c.l.b16 %v1811
    %v1851 = vpack.c.b16 %v1836, %v1835
    %v1852 = vpack.c.b16 %v1838, %v1837
    %v1853 = vpack.c.b16 %v1840, %v1839
    %v1854 = vpack.c.b16 %v1842, %v1841
    %v1855 = vpack.c.b16 %v1844, %v1843
    %v1856 = vpack.c.b16 %v1846, %v1845
    %v1857 = vpack.c.b16 %v1848, %v1847
    %v1858 = vpack.c.b16 %v1850, %v1849
    %1867 = vmatprep.subr.bf16.mxu0 0
    %1868 = vmatpush1.bf16.msra.mxu0 %v1851
    %1869 = vmatprep.subr.bf16.mxu0 0
    %1870 = vmatpush1.bf16.msra.mxu0 %v1852
    %1871 = vmatprep.subr.bf16.mxu0 0
    %1872 = vmatpush1.bf16.msra.mxu0 %v1853
    %1873 = vmatprep.subr.bf16.mxu0 0
    %1874 = vmatpush1.bf16.msra.mxu0 %v1854
    %1875 = vmatprep.subr.bf16.mxu0 0
    %1876 = vmatpush1.bf16.msra.mxu0 %v1855
    %1877 = vmatprep.subr.bf16.mxu0 0
    %1878 = vmatpush1.bf16.msra.mxu0 %v1856
    %1879 = vmatprep.subr.bf16.mxu0 0
    %1880 = vmatpush1.bf16.msra.mxu0 %v1857
    %1881 = vmatprep.subr.bf16.mxu0 0
    %1882 = vmatpush1.bf16.msra.mxu0 %v1858
    %1883 = vmatprep.subr.bf16.mxu0 0
    %1884 = vmatpush1.bf16.msra.mxu0 0
    %1885 = vmatprep.subr.bf16.mxu0 0
    %1886 = vmatpush1.bf16.msra.mxu0 0
    %1887 = vmatprep.subr.bf16.mxu0 0
    %1888 = vmatpush1.bf16.msra.mxu0 0
    %1889 = vmatprep.subr.bf16.mxu0 0
    %1890 = vmatpush1.bf16.msra.mxu0 0
    %1891 = vmatprep.subr.bf16.mxu0 0
    %1892 = vmatpush1.bf16.msra.mxu0 0
    %1893 = vmatprep.subr.bf16.mxu0 0
    %1894 = vmatpush1.bf16.msra.mxu0 0
    %1895 = vmatprep.subr.bf16.mxu0 0
    %1896 = vmatpush1.bf16.msra.mxu0 0
    %1897 = vmatprep.subr.bf16.mxu0 0
    %1898 = vmatpush1.bf16.msra.mxu0 0
    %1899 = vmatprep.mubr.bf16.mxu0 0
    %1900 = vmatmul.mubr.bf16.gmra.mrb[0].mxu0 %v1795
    %v1901 = vpop.f32.mrb[0].mxu0
    %v1902 = vadd.f32 %v1817, %v1901
    %v1903 = vpop.f32.mrb[0].mxu0
    %v1904 = vpop.f32.mrb[0].mxu0
    %v1905 = vadd.f32 %v1817, %v1904
    %v1906 = vpop.f32.mrb[0].mxu0
    %1907 = vdwg.mxu0
    %v1908 = vmax.f32 %v1902, 0.0
    %v1909 = vmax.f32 %v1905, 0.0
    %v1910 = vmin.f32 %v1908, 6.0
    %v1911 = vmin.f32 %v1909, 6.0
    %v1912 = vpack.c.bf16 %v1911, %v1910
    %v1913 = vld [vmem:[#allocation10] sm:$0xf]
    %v1914 = vld [vmem:[#allocation10 + $0x4] sm:$0xf]
    %v1915 = vld [vmem:[#allocation10 + $0x8] sm:$0xf]
    %v1916 = vld [vmem:[#allocation10 + $0xc] sm:$0xf]
    %v1917 = vld [vmem:[#allocation10 + $0x10] sm:$0xf]
    %v1918 = vld [vmem:[#allocation10 + $0x14] sm:$0xf]
    %v1919 = vld [vmem:[#allocation10 + $0x18] sm:$0xf]
    %v1920 = vld [vmem:[#allocation10 + $0x1c] sm:$0xf]
    %v1921 = vld [vmem:[#allocation10 + $0x20] sm:$0xf]
    %v1922 = vld [vmem:[#allocation10 + $0x24] sm:$0xf]
    %v1923 = vld [vmem:[#allocation10 + $0x28] sm:$0xf]
    %v1924 = vld [vmem:[#allocation10 + $0x2c] sm:$0xf]
    %v1925 = vld [vmem:[#allocation10 + $0x30] sm:$0xf]
    %v1926 = vld [vmem:[#allocation10 + $0x34] sm:$0xf]
    %v1927 = vld [vmem:[#allocation10 + $0x38] sm:$0xf]
    %v1928 = vld [vmem:[#allocation10 + $0x3c] sm:$0xf]
    %v1929 = vld [vmem:[%s14] sm:$0x1]
    %v1931 = vlaneseq
    %v1932 = vshrl.u32 %v1931, 7
    %v1933 = vsub.s32 0, %v1932
    %v1934 = vrot.slane %v1929, %v1933
    %v1952 = vunpack.c.l.b16 %v1913
    %v1953 = vunpack.c.l.b16 %v1914
    %v1954 = vunpack.c.l.b16 %v1915
    %v1955 = vunpack.c.l.b16 %v1916
    %v1956 = vunpack.c.l.b16 %v1917
    %v1957 = vunpack.c.l.b16 %v1918
    %v1958 = vunpack.c.l.b16 %v1919
    %v1959 = vunpack.c.l.b16 %v1920
    %v1960 = vunpack.c.l.b16 %v1921
    %v1961 = vunpack.c.l.b16 %v1922
    %v1962 = vunpack.c.l.b16 %v1923
    %v1963 = vunpack.c.l.b16 %v1924
    %v1964 = vunpack.c.l.b16 %v1925
    %v1965 = vunpack.c.l.b16 %v1926
    %v1966 = vunpack.c.l.b16 %v1927
    %v1967 = vunpack.c.l.b16 %v1928
    %v1968 = vpack.c.b16 %v1953, %v1952
    %v1969 = vpack.c.b16 %v1955, %v1954
    %v1970 = vpack.c.b16 %v1957, %v1956
    %v1971 = vpack.c.b16 %v1959, %v1958
    %v1972 = vpack.c.b16 %v1961, %v1960
    %v1973 = vpack.c.b16 %v1963, %v1962
    %v1974 = vpack.c.b16 %v1965, %v1964
    %v1975 = vpack.c.b16 %v1967, %v1966
    %1984 = vmatprep.subr.bf16.mxu0 0
    %1985 = vmatpush1.bf16.msra.mxu0 %v1968
    %1986 = vmatprep.subr.bf16.mxu0 0
    %1987 = vmatpush1.bf16.msra.mxu0 %v1969
    %1988 = vmatprep.subr.bf16.mxu0 0
    %1989 = vmatpush1.bf16.msra.mxu0 %v1970
    %1990 = vmatprep.subr.bf16.mxu0 0
    %1991 = vmatpush1.bf16.msra.mxu0 %v1971
    %1992 = vmatprep.subr.bf16.mxu0 0
    %1993 = vmatpush1.bf16.msra.mxu0 %v1972
    %1994 = vmatprep.subr.bf16.mxu0 0
    %1995 = vmatpush1.bf16.msra.mxu0 %v1973
    %1996 = vmatprep.subr.bf16.mxu0 0
    %1997 = vmatpush1.bf16.msra.mxu0 %v1974
    %1998 = vmatprep.subr.bf16.mxu0 0
    %1999 = vmatpush1.bf16.msra.mxu0 %v1975
    %2000 = vmatprep.subr.bf16.mxu0 0
    %2001 = vmatpush1.bf16.msra.mxu0 0
    %2002 = vmatprep.subr.bf16.mxu0 0
    %2003 = vmatpush1.bf16.msra.mxu0 0
    %2004 = vmatprep.subr.bf16.mxu0 0
    %2005 = vmatpush1.bf16.msra.mxu0 0
    %2006 = vmatprep.subr.bf16.mxu0 0
    %2007 = vmatpush1.bf16.msra.mxu0 0
    %2008 = vmatprep.subr.bf16.mxu0 0
    %2009 = vmatpush1.bf16.msra.mxu0 0
    %2010 = vmatprep.subr.bf16.mxu0 0
    %2011 = vmatpush1.bf16.msra.mxu0 0
    %2012 = vmatprep.subr.bf16.mxu0 0
    %2013 = vmatpush1.bf16.msra.mxu0 0
    %2014 = vmatprep.subr.bf16.mxu0 0
    %2015 = vmatpush1.bf16.msra.mxu0 0
    %2016 = vmatprep.mubr.bf16.mxu0 0
    %2017 = vmatmul.mubr.bf16.gmra.mrb[0].mxu0 %v1912
    %v2018 = vpop.f32.mrb[0].mxu0
    %v2019 = vadd.f32 %v1934, %v2018
    %v2020 = vpop.f32.mrb[0].mxu0
    %v2021 = vpop.f32.mrb[0].mxu0
    %v2022 = vadd.f32 %v1934, %v2021
    %v2023 = vpop.f32.mrb[0].mxu0
    %2024 = vdwg.mxu0
    %v2025 = vxor.u32 %v2019, 2147483648
    %v2026 = vxor.u32 %v2022, 2147483648
    %v2027 = vmul.f32 %v2025, 1.442695
    %v2028 = vpow.pop %v2027
    %v2029 = vmul.f32 %v2026, 1.442695
    %v2030 = vpow.pop %v2029
    %v2031 = vadd.f32 %v2028, 1.0
    %v2032 = vadd.f32 %v2030, 1.0
    %v2033 = vrcp.pop %v2031
    %v2034 = vmul.f32 1.0, %v2033
    %v2035 = vrcp.pop %v2032
    %v2036 = vmul.f32 1.0, %v2035
    %vm2037 = vcmask 7168
    %2038 = vst.msk [vmem:[%s15] sm:$0xff] %vm2037, %v2034
    %2039 = vst.msk [vmem:[%s15 + $0x8] sm:$0xff] %vm2037, %v2036
    // Predicated region
    $region86: #{_ftd_forward_impl.1} parent=1 // pred_check
      _
    $region87: #{_ftd_forward_impl.1} parent=1 // pred_check_branch
      %2041 = sbr.rel (0) target = $region89
    $region88: #{_ftd_forward_impl.1} parent=1 // pred_region
      _
    $region89: #{_ftd_forward_impl.1} parent=1 // pred_fallthru
      _
    // Predicated region
    $region90: #{_ftd_forward_impl.1} parent=1 // pred_check
      _
    $region91: #{_ftd_forward_impl.1} parent=1 // pred_check_branch
      %2043 = sbr.rel (0) target = $region93
    $region92: #{_ftd_forward_impl.1} parent=1 // pred_region
      _
    $region93: #{_ftd_forward_impl.1} parent=1 // pred_fallthru
      _
    %2044 = vsyncpa [#allocation3], 1
    %2045 = vsyncpa [#allocation5], 1
    %2046 = vsyncpa [#allocation8], 1
    %2047 = vsyncpa [#allocation11], 1

</llo_original>
